<compile_context>
chip_gen: v7x
topology: tpu7x:2x2x1
jax: 0.10.0
libtpu: 0.0.40
codegen_flags: <defaults>
</compile_context>

<pallas_src>
import functools
import math

import jax
import jax.numpy as jnp
from jax.experimental import pallas as pl
from jax.experimental.pallas import tpu as pltpu

_NEG_INF = -1e30  # finite "minus infinity" keeps the online softmax NaN-free


# --------------------------------------------------------------------------- #
# helpers
# --------------------------------------------------------------------------- #
@functools.lru_cache(maxsize=None)
def _vmem_limit_bytes():
    """Scoped-VMEM limit above the 16/32 MiB defaults but safely below physical
    VMEM on every generation (v5e/v6e: 128 MiB, v7x: 64 MiB)."""
    try:
        cap = int(pltpu.get_tpu_info().vmem_capacity_bytes)
    except Exception:
        cap = 64 * 1024 * 1024
    return max(32 * 1024 * 1024, min(cap - 8 * 1024 * 1024, 100 * 1024 * 1024))


def _compiler_params(dim_sem):
    return pltpu.CompilerParams(dimension_semantics=dim_sem,
                                vmem_limit_bytes=_vmem_limit_bytes())


def _pick_tile(n, target):
    """Largest multiple-of-128 tile <= target that divides n (or n itself)."""
    if n % 128 != 0:
        return n
    t = max(128, min(n, (target // 128) * 128))
    while n % t != 0:
        t -= 128
    return t


def _pad_rows(x2d, tm):
    m = x2d.shape[0]
    mp = pl.cdiv(m, tm) * tm
    if mp != m:  # pad token remainder; padded rows are sliced off afterwards
        x2d = jnp.pad(x2d, ((0, mp - m), (0, 0)))
    return x2d


# --------------------------------------------------------------------------- #
# kernel 1: fused RMSNorm + matmul   (attention_norm -> QKV projection)
# --------------------------------------------------------------------------- #
def _rmsnorm_matmul_kernel(x_ref, g_ref, w_ref, o_ref, *, eps):
    # x_ref: (tm, d) token tile; g_ref: (1, d) norm weight; w_ref: (d, n).
    # Norm math in f32; normalized tile is cast back to the weight dtype so the
    # MXU sees native (bf16) operands with f32 accumulation.
    x = x_ref[...].astype(jnp.float32)
    inv = jax.lax.rsqrt(jnp.mean(x * x, axis=-1, keepdims=True) + eps)
    xn = (x * inv * g_ref[...].astype(jnp.float32)).astype(w_ref.dtype)
    o_ref[...] = jnp.dot(xn, w_ref[...],
                         preferred_element_type=jnp.float32).astype(o_ref.dtype)


def rmsnorm_matmul(x2d, gamma, w_t, *, eps, tm=256):
    """(RMSNorm(x) * gamma) @ w_t, w_t in (in, out) layout, tiled over tokens."""
    m, d = x2d.shape
    n = w_t.shape[1]
    xp = _pad_rows(x2d, tm)
    mp = xp.shape[0]
    out = pl.pallas_call(
        functools.partial(_rmsnorm_matmul_kernel, eps=eps),
        out_shape=jax.ShapeDtypeStruct((mp, n), x2d.dtype),
        grid_spec=pltpu.PrefetchScalarGridSpec(
            num_scalar_prefetch=0,
            grid=(mp // tm,),
            in_specs=[
                pl.BlockSpec((tm, d), lambda i: (i, 0)),
                pl.BlockSpec((1, d), lambda i: (0, 0)),
                pl.BlockSpec((d, n), lambda i: (0, 0)),
            ],
            out_specs=pl.BlockSpec((tm, n), lambda i: (i, 0)),
        ),
        compiler_params=_compiler_params(("parallel",)),
    )(xp, gamma, w_t)
    return out[:m]


# --------------------------------------------------------------------------- #
# kernel 2: matmul + residual add    (wo projection fused with `x + attn`)
# --------------------------------------------------------------------------- #
def _matmul_residual_kernel(a_ref, w_ref, r_ref, o_ref):
    acc = jnp.dot(a_ref[...], w_ref[...], preferred_element_type=jnp.float32)
    o_ref[...] = (r_ref[...].astype(jnp.float32) + acc).astype(o_ref.dtype)


def matmul_residual(a2d, w_t, resid2d, *, tm=256):
    """resid + a @ w_t (residual fused into the epilogue; no extra HBM trip)."""
    m, k = a2d.shape
    n = w_t.shape[1]
    ap, rp = _pad_rows(a2d, tm), _pad_rows(resid2d, tm)
    mp = ap.shape[0]
    out = pl.pallas_call(
        _matmul_residual_kernel,
        out_shape=jax.ShapeDtypeStruct((mp, n), resid2d.dtype),
        grid_spec=pltpu.PrefetchScalarGridSpec(
            num_scalar_prefetch=0,
            grid=(mp // tm,),
            in_specs=[
                pl.BlockSpec((tm, k), lambda i: (i, 0)),
                pl.BlockSpec((k, n), lambda i: (0, 0)),
                pl.BlockSpec((tm, n), lambda i: (i, 0)),
            ],
            out_specs=pl.BlockSpec((tm, n), lambda i: (i, 0)),
        ),
        compiler_params=_compiler_params(("parallel",)),
    )(ap, w_t, rp)
    return out[:m]


# --------------------------------------------------------------------------- #
# kernel 3: fused ffn_norm + SwiGLU FFN + residual, hidden-dim tiled
# --------------------------------------------------------------------------- #
def _ffn_kernel(h_ref, g_ref, w1t_ref, w3t_ref, w2t_ref, o_ref,
                xn_ref, acc_ref, *, eps):
    # Grid = (token tiles, hidden tiles). Hidden axis is last + "arbitrary";
    # the normalized activations and the f32 accumulator carry across it.
    j = pl.program_id(1)

    @pl.when(j == 0)
    def _():
        h = h_ref[...].astype(jnp.float32)
        inv = jax.lax.rsqrt(jnp.mean(h * h, axis=-1, keepdims=True) + eps)
        xn_ref[...] = (h * inv * g_ref[...].astype(jnp.float32)).astype(xn_ref.dtype)
        acc_ref[...] = jnp.zeros(acc_ref.shape, acc_ref.dtype)

    xn = xn_ref[...]  # native-dtype (bf16) MXU operand, computed once per token tile
    x1 = jnp.dot(xn, w1t_ref[...], preferred_element_type=jnp.float32)
    x3 = jnp.dot(xn, w3t_ref[...], preferred_element_type=jnp.float32)
    # SiLU(x1) * x3 in f32; sigmoid's divide runs on the EUP via approx reciprocal.
    gate = x1 * pl.reciprocal(1.0 + jnp.exp(-x1), approx=True) * x3
    acc_ref[...] += jnp.dot(gate.astype(w2t_ref.dtype), w2t_ref[...],
                            preferred_element_type=jnp.float32)

    @pl.when(j == pl.num_programs(1) - 1)
    def _():
        o_ref[...] = (h_ref[...].astype(jnp.float32) + acc_ref[...]).astype(o_ref.dtype)


def feed_forward_block(h2d, gamma, w1_t, w3_t, w2_t, *, eps, tm=256, hidden_tile=1024):
    """h + W2( SiLU(W1(n)) * W3(n) ) with n = RMSNorm(h)*gamma, hidden-dim tiled."""
    m, d = h2d.shape
    hidden = w1_t.shape[1]
    th = _pick_tile(hidden, hidden_tile)
    hp = _pad_rows(h2d, tm)
    mp = hp.shape[0]
    out = pl.pallas_call(
        functools.partial(_ffn_kernel, eps=eps),
        out_shape=jax.ShapeDtypeStruct((mp, d), h2d.dtype),
        grid_spec=pltpu.PrefetchScalarGridSpec(
            num_scalar_prefetch=0,
            grid=(mp // tm, hidden // th),
            in_specs=[
                pl.BlockSpec((tm, d), lambda i, j: (i, 0)),
                pl.BlockSpec((1, d), lambda i, j: (0, 0)),
                pl.BlockSpec((d, th), lambda i, j: (0, j)),
                pl.BlockSpec((d, th), lambda i, j: (0, j)),
                pl.BlockSpec((th, d), lambda i, j: (j, 0)),
            ],
            out_specs=pl.BlockSpec((tm, d), lambda i, j: (i, 0)),
            scratch_shapes=[
                pltpu.VMEM((tm, d), h2d.dtype),    # normalized activations (reused over j)
                pltpu.VMEM((tm, d), jnp.float32),  # f32 output accumulator
            ],
        ),
        compiler_params=_compiler_params(("parallel", "arbitrary")),
    )(hp, gamma, w1_t, w3_t, w2_t)
    return out[:m]


# --------------------------------------------------------------------------- #
# kernel 4: flash attention (online softmax, causal, GQA via kv-head index_map)
# --------------------------------------------------------------------------- #
def _flash_attn_kernel(q_ref, k_ref, v_ref, o_ref, m_ref, l_ref, acc_ref,
                       *, scale, causal, tq, tk):
    qi = pl.program_id(2)
    ki = pl.program_id(3)

    @pl.when(ki == 0)
    def _():
        m_ref[...] = jnp.full(m_ref.shape, _NEG_INF, jnp.float32)
        l_ref[...] = jnp.zeros(l_ref.shape, jnp.float32)
        acc_ref[...] = jnp.zeros(acc_ref.shape, jnp.float32)

    def _step():
        q = q_ref[0, 0]
        k = k_ref[0, 0]
        v = v_ref[0, 0]
        s = jax.lax.dot_general(q, k, (((1,), (1,)), ((), ())),
                                preferred_element_type=jnp.float32) * scale
        if causal:
            rows = qi * tq + jax.lax.broadcasted_iota(jnp.int32, (tq, tk), 0)
            cols = ki * tk + jax.lax.broadcasted_iota(jnp.int32, (tq, tk), 1)
            s = jnp.where(cols <= rows, s, _NEG_INF)
        m_new = jnp.maximum(m_ref[...], s.max(axis=-1, keepdims=True))
        alpha = jnp.exp(m_ref[...] - m_new)
        p = jnp.exp(s - m_new)
        l_ref[...] = alpha * l_ref[...] + p.sum(axis=-1, keepdims=True)
        acc_ref[...] = alpha * acc_ref[...] + jnp.dot(
            p.astype(v.dtype), v, preferred_element_type=jnp.float32)
        m_ref[...] = m_new

    if causal:
        # Skip kv blocks entirely above the causal diagonal.
        pl.when(ki * tk <= qi * tq + (tq - 1))(_step)
    else:
        _step()

    @pl.when(ki == pl.num_programs(3) - 1)
    def _():
        o_ref[0, 0] = (acc_ref[...] * pl.reciprocal(l_ref[...], approx=True)
                       ).astype(o_ref.dtype)


def flash_attention(q, k, v, *, causal=True, tq=128, tk=128):
    """q: (B, H, S, Dh); k/v: (B, Hkv, S, Dh). Grouped-query (causal) attention.
    KV heads are shared across query-head groups via the index_map instead of
    materializing repeat_kv copies in HBM."""
    b, h, s, dh = q.shape
    hkv = k.shape[1]
    hpg = h // hkv
    tq = _pick_tile(s, tq)
    tk = _pick_tile(s, tk)
    scale = 1.0 / math.sqrt(dh)
    kernel = functools.partial(_flash_attn_kernel, scale=scale, causal=causal,
                               tq=tq, tk=tk)
    return pl.pallas_call(
        kernel,
        out_shape=jax.ShapeDtypeStruct((b, h, s, dh), q.dtype),
        grid_spec=pltpu.PrefetchScalarGridSpec(
            num_scalar_prefetch=0,
            grid=(b, h, s // tq, s // tk),
            in_specs=[
                pl.BlockSpec((1, 1, tq, dh), lambda bi, hi, qi, ki: (bi, hi, qi, 0)),
                pl.BlockSpec((1, 1, tk, dh), lambda bi, hi, qi, ki: (bi, hi // hpg, ki, 0)),
                pl.BlockSpec((1, 1, tk, dh), lambda bi, hi, qi, ki: (bi, hi // hpg, ki, 0)),
            ],
            out_specs=pl.BlockSpec((1, 1, tq, dh), lambda bi, hi, qi, ki: (bi, hi, qi, 0)),
            scratch_shapes=[
                pltpu.VMEM((tq, 1), jnp.float32),   # running max
                pltpu.VMEM((tq, 1), jnp.float32),   # running denom
                pltpu.VMEM((tq, dh), jnp.float32),  # output accumulator
            ],
        ),
        compiler_params=_compiler_params(("parallel", "parallel", "parallel", "arbitrary")),
    )(q, k, v)


# --------------------------------------------------------------------------- #
# rotary embedding (plain JAX glue between kernels)
# --------------------------------------------------------------------------- #
def precompute_freqs_cis(head_dim, max_seqlen, theta):
    freqs = 1.0 / (theta ** (jnp.arange(0, head_dim, 2, dtype=jnp.float32) / head_dim))
    t = jnp.arange(max_seqlen, dtype=jnp.float32)
    angles = jnp.outer(t, freqs)                       # (S, Dh//2)
    cos, sin = jnp.cos(angles), jnp.sin(angles)
    row0 = jnp.stack([cos, -sin], axis=-1)
    row1 = jnp.stack([sin, cos], axis=-1)
    return jnp.stack([row0, row1], axis=-2)            # (S, Dh//2, 2, 2)


def apply_rotary_emb(xq, xk, freqs_cis):
    # Matches the torch pairwise (interleaved) rotary: out_pair = R(theta) @ pair.
    # TODO(synk): fuse RoPE into the QKV projection kernel epilogue to avoid an HBM round trip.
    def rot(x):
        b, s, h, d = x.shape
        xf = x.astype(jnp.float32).reshape(b, s, h, d // 2, 1, 2)
        fc = freqs_cis[:s].reshape(1, s, 1, d // 2, 2, 2).astype(jnp.float32)
        return (xf * fc).sum(-1).reshape(b, s, h, d).astype(x.dtype)
    return rot(xq), rot(xk)


# --------------------------------------------------------------------------- #
# parameters + full TransformerBlock forward
# --------------------------------------------------------------------------- #
def compute_hidden_dim(dim, multiple_of, ffn_dim_multiplier):
    hidden = int(2 * (4 * dim) / 3)
    if ffn_dim_multiplier is not None:
        hidden = int(ffn_dim_multiplier * hidden)
    return multiple_of * ((hidden + multiple_of - 1) // multiple_of)


def init_transformer_block_params(key, *, dim, head_dim, n_heads, n_kv_heads,
                                  multiple_of, ffn_dim_multiplier, dtype):
    hidden = compute_hidden_dim(dim, multiple_of, ffn_dim_multiplier)
    in_std = dim ** -0.5
    ffn_out_std = hidden ** -0.5
    kq, kk, kv, ko, k1, k3, k2 = jax.random.split(key, 7)

    def tn(k, shape, std):  # nn.init.trunc_normal_(std=std, a=-3*std, b=3*std)
        return (std * jax.random.truncated_normal(k, -3.0, 3.0, shape, jnp.float32)
                ).astype(dtype)

    # torch nn.Linear weights are (out, in); transpose ONCE here to the (in, out)
    # layout the kernels consume (review: no per-call w.T in the wrapper).
    wq = tn(kq, (n_heads * head_dim, dim), in_std)
    wk = tn(kk, (n_kv_heads * head_dim, dim), in_std)
    wv = tn(kv, (n_kv_heads * head_dim, dim), in_std)
    wo = tn(ko, (dim, n_heads * head_dim), in_std)
    w1 = tn(k1, (hidden, dim), in_std)
    w3 = tn(k3, (hidden, dim), in_std)
    w2 = tn(k2, (dim, hidden), ffn_out_std)

    return {
        "n_heads": n_heads, "n_kv_heads": n_kv_heads, "head_dim": head_dim,
        "wqkv_t": jnp.concatenate([wq.T, wk.T, wv.T], axis=1),  # (dim, (H+2*Hkv)*Dh)
        "wo_t": wo.T,                                           # (H*Dh, dim)
        "w1_t": w1.T, "w3_t": w3.T,                             # (dim, hidden)
        "w2_t": w2.T,                                           # (hidden, dim)
        "attn_norm": jnp.ones((1, dim), dtype),
        "ffn_norm": jnp.ones((1, dim), dtype),
    }


def transformer_block_forward(params, x, freqs_cis, *, eps=1e-5, causal=True,
                              tm=256, ffn_hidden_tile=1024):
    """out = h + FFN(ffn_norm(h)),  h = x + Attn(attention_norm(x))  (sdpa/causal)."""
    b, s, d = x.shape
    n_heads, n_kv, hd = params["n_heads"], params["n_kv_heads"], params["head_dim"]
    x2d = x.reshape(b * s, d)

    # attention_norm + fused QKV projection (Pallas)
    qkv = rmsnorm_matmul(x2d, params["attn_norm"], params["wqkv_t"], eps=eps, tm=tm)
    q_sz, kv_sz = n_heads * hd, n_kv * hd
    xq = qkv[:, :q_sz].reshape(b, s, n_heads, hd)
    xk = qkv[:, q_sz:q_sz + kv_sz].reshape(b, s, n_kv, hd)
    xv = qkv[:, q_sz + kv_sz:].reshape(b, s, n_kv, hd)

    # rotary embedding (JAX glue)
    xq, xk = apply_rotary_emb(xq, xk, freqs_cis)

    # (B, S, H, Dh) -> (B, H, S, Dh); flash attention kernel (causal, GQA)
    q = jnp.transpose(xq, (0, 2, 1, 3))
    k = jnp.transpose(xk, (0, 2, 1, 3))
    v = jnp.transpose(xv, (0, 2, 1, 3))
    attn = flash_attention(q, k, v, causal=causal)
    attn2d = jnp.transpose(attn, (0, 2, 1, 3)).reshape(b * s, n_heads * hd)

    # wo projection + first residual (Pallas)
    h2d = matmul_residual(attn2d, params["wo_t"], x2d, tm=tm)

    # ffn_norm + SwiGLU FFN + second residual (Pallas, hidden-dim tiled)
    out2d = feed_forward_block(h2d, params["ffn_norm"], params["w1_t"],
                               params["w3_t"], params["w2_t"],
                               eps=eps, tm=tm, hidden_tile=ffn_hidden_tile)
    return out2d.reshape(b, s, d)


# --------------------------------------------------------------------------- #
# pure-JAX float32 reference (mirrors the PyTorch module, sdpa + causal path)
# --------------------------------------------------------------------------- #
def transformer_block_reference(params, x, freqs_cis, *, eps=1e-5):
    f32 = jnp.float32
    n_heads, n_kv, hd = params["n_heads"], params["n_kv_heads"], params["head_dim"]
    b, s, d = x.shape
    xf = x.astype(f32)

    def rms(z, g):
        inv = jax.lax.rsqrt(jnp.mean(z * z, axis=-1, keepdims=True) + eps)
        return z * inv * g.astype(f32).reshape(-1)

    qkv = rms(xf, params["attn_norm"]) @ params["wqkv_t"].astype(f32)
    q_sz, kv_sz = n_heads * hd, n_kv * hd
    xq = qkv[..., :q_sz].reshape(b, s, n_heads, hd)
    xk = qkv[..., q_sz:q_sz + kv_sz].reshape(b, s, n_kv, hd)
    xv = qkv[..., q_sz + kv_sz:].reshape(b, s, n_kv, hd)
    xq, xk = apply_rotary_emb(xq, xk, freqs_cis)
    hpg = n_heads // n_kv
    xk = jnp.repeat(xk, hpg, axis=2)    # repeat_kv (interleaved)
    xv = jnp.repeat(xv, hpg, axis=2)
    q = jnp.transpose(xq, (0, 2, 1, 3)).astype(f32)
    k = jnp.transpose(xk, (0, 2, 1, 3)).astype(f32)
    v = jnp.transpose(xv, (0, 2, 1, 3)).astype(f32)
    scores = jnp.einsum("bhqd,bhkd->bhqk", q, k) / math.sqrt(hd)
    mask = jnp.tril(jnp.ones((s, s), bool))
    scores = jnp.where(mask[None, None], scores, -jnp.inf)
    attn = jnp.einsum("bhqk,bhkd->bhqd", jax.nn.softmax(scores, axis=-1), v)
    attn = jnp.transpose(attn, (0, 2, 1, 3)).reshape(b, s, n_heads * hd)
    h = xf + attn @ params["wo_t"].astype(f32)
    hn = rms(h, params["ffn_norm"])
    x1 = hn @ params["w1_t"].astype(f32)
    x3 = hn @ params["w3_t"].astype(f32)
    return h + (jax.nn.silu(x1) * x3) @ params["w2_t"].astype(f32)


# --------------------------------------------------------------------------- #
# demo
# --------------------------------------------------------------------------- #
if __name__ == "__main__":
    # Small but 128-aligned shapes (review: keep lane dims multiples of 128).
    dim, n_heads, n_kv_heads, head_dim = 256, 2, 1, 128
    multiple_of, ffn_dim_multiplier = 256, None        # -> hidden_dim = 768
    norm_eps, rope_theta = 1e-5, 10000.0
    batch, seq = 2, 256
    dtype = jnp.bfloat16  # native bf16 MXU operands, f32 accumulation in-kernel

    key = jax.random.PRNGKey(0)
    kx, kp = jax.random.split(key)
    params = init_transformer_block_params(
        kp, dim=dim, head_dim=head_dim, n_heads=n_heads, n_kv_heads=n_kv_heads,
        multiple_of=multiple_of, ffn_dim_multiplier=ffn_dim_multiplier, dtype=dtype)
    x = jax.random.normal(kx, (batch, seq, dim), jnp.float32).astype(dtype)
    freqs_cis = precompute_freqs_cis(head_dim, seq, rope_theta)

    # ffn_hidden_tile=384 exercises the hidden-dim accumulation path (768 = 2*384).
    out = transformer_block_forward(params, x, freqs_cis, eps=norm_eps,
                                    causal=True, tm=256, ffn_hidden_tile=384)
    out = jax.block_until_ready(out)
    assert out.shape == x.shape and out.dtype == x.dtype

    ref = transformer_block_reference(params, x, freqs_cis, eps=norm_eps)
    err = float(jnp.mean(jnp.abs(out.astype(jnp.float32) - ref))
                / (jnp.mean(jnp.abs(ref)) + 1e-6))
    assert err < 5e-2, f"mismatch vs reference: rel_err={err}"
    print("KERNEL_OK")
</pallas_src>

<mosaic_0001>
module attributes {stable_mosaic.version = 11 : i64} {
  func.func @_rmsnorm_matmul_kernel(%arg0: i32, %arg1: memref<256x256xbf16, #tpu.memory_space<vmem>>, %arg2: memref<1x256xbf16, #tpu.memory_space<vmem>>, %arg3: memref<256x512xbf16, #tpu.memory_space<vmem>>, %arg4: memref<256x512xbf16, #tpu.memory_space<vmem>>) attributes {dimension_semantics = [#tpu.dimension_semantics<parallel>], iteration_bounds = array<i64: 2>, scalar_prefetch = 0 : i64, scratch_operands = 0 : i64, tpu.core_type = #tpu.core_type<tc>, window_params = [{transform_indices = @transform_0, window_bounds = array<i64: 256, 256>}, {pipeline_mode = #tpu.pipeline_mode<synchronous>, transform_indices = @transform_1, window_bounds = array<i64: 1, 256>}, {pipeline_mode = #tpu.pipeline_mode<synchronous>, transform_indices = @transform_2, window_bounds = array<i64: 256, 512>}, {transform_indices = @transform_3, window_bounds = array<i64: 256, 512>}]} {
    %c0 = arith.constant 0 : index
    %c0_0 = arith.constant 0 : index
    %0 = vector.load %arg1[%c0, %c0_0] : memref<256x256xbf16, #tpu.memory_space<vmem>>, vector<256x256xbf16>
    %1 = arith.extf %0 : vector<256x256xbf16> to vector<256x256xf32>
    %2 = arith.mulf %1, %1 : vector<256x256xf32>
    %cst = arith.constant dense<0.000000e+00> : vector<256xf32>
    %3 = vector.multi_reduction <add>, %2, %cst [1] : vector<256x256xf32> to vector<256xf32>
    %4 = vector.shape_cast %3 : vector<256xf32> to vector<256x1xf32>
    %cst_1 = arith.constant 2.560000e+02 : f32
    %5 = vector.broadcast %cst_1 : f32 to vector<256x1xf32>
    %6 = arith.divf %4, %5 : vector<256x1xf32>
    %cst_2 = arith.constant 9.99999974E-6 : f32
    %7 = vector.broadcast %cst_2 : f32 to vector<256x1xf32>
    %8 = arith.addf %6, %7 : vector<256x1xf32>
    %9 = math.rsqrt %8 : vector<256x1xf32>
    %10 = vector.broadcast %9 : vector<256x1xf32> to vector<256x256xf32>
    %11 = arith.mulf %1, %10 : vector<256x256xf32>
    %c0_3 = arith.constant 0 : index
    %c0_4 = arith.constant 0 : index
    %12 = vector.load %arg2[%c0_3, %c0_4] : memref<1x256xbf16, #tpu.memory_space<vmem>>, vector<1x256xbf16>
    %13 = arith.extf %12 : vector<1x256xbf16> to vector<1x256xf32>
    %14 = vector.broadcast %13 : vector<1x256xf32> to vector<256x256xf32>
    %15 = arith.mulf %11, %14 : vector<256x256xf32>
    %16 = arith.truncf %15 : vector<256x256xf32> to vector<256x256xbf16>
    %c0_5 = arith.constant 0 : index
    %c0_6 = arith.constant 0 : index
    %17 = vector.load %arg3[%c0_5, %c0_6] : memref<256x512xbf16, #tpu.memory_space<vmem>>, vector<256x512xbf16>
    %cst_7 = arith.constant dense<0.000000e+00> : vector<256x512xf32>
    %18 = tpu.matmul %16, %17, %cst_7 {dimension_numbers = #tpu.dot_dimension_numbers<[1], [0], [0], [1], [0, 0, 1, 1], [], []>} : vector<256x256xbf16>, vector<256x512xbf16>, vector<256x512xf32> -> vector<256x512xf32>
    %19 = arith.truncf %18 : vector<256x512xf32> to vector<256x512xbf16>
    %c0_8 = arith.constant 0 : index
    %c0_9 = arith.constant 0 : index
    %20 = vector.load %arg4[%c0_8, %c0_9] : memref<256x512xbf16, #tpu.memory_space<vmem>>, vector<256x512xbf16>
    tpu.vector_store %arg4[%c0_8, %c0_9], %19 {strides = array<i32>} : memref<256x512xbf16, #tpu.memory_space<vmem>>, vector<256x512xbf16>,
    return
  }
  func.func @transform_0(%arg0: i32) -> (i32, i32) {
    %c0_i32 = arith.constant 0 : i32
    %c0_i32_0 = arith.constant 0 : i32
    return %arg0, %c0_i32 : i32, i32
  }
  func.func @transform_1(%arg0: i32) -> (i32, i32) {
    %c0_i32 = arith.constant 0 : i32
    %c0_i32_0 = arith.constant 0 : i32
    %c0_i32_1 = arith.constant 0 : i32
    return %c0_i32, %c0_i32_0 : i32, i32
  }
  func.func @transform_2(%arg0: i32) -> (i32, i32) {
    %c0_i32 = arith.constant 0 : i32
    %c0_i32_0 = arith.constant 0 : i32
    %c0_i32_1 = arith.constant 0 : i32
    return %c0_i32, %c0_i32_0 : i32, i32
  }
  func.func @transform_3(%arg0: i32) -> (i32, i32) {
    %c0_i32 = arith.constant 0 : i32
    %c0_i32_0 = arith.constant 0 : i32
    return %arg0, %c0_i32 : i32, i32
  }
}

</mosaic_0001>

<llo_original>
// kernel: tpu_custom_call.1
$region0: #{tpu_custom_call.1}
  #allocation0 [shape = 'u32[]', space=smem, size = 0x4, offset = 0x4, fixed_abs, tag = 'smem constant byte address 0x4 - core index']
  #allocation1 [shape = 'u32[144,128]{1,0:T(1,128)}', space=vmem, size = 0x12000, scoped, tag = 'internal scratch']
  %s0 = inlined_call_operand.hbm [shape: bf16[512,256], index: 0, kind: input, shape index: {}]
  %s1 = inlined_call_operand.vmem [shape: bf16[1,256], index: 1, kind: input, shape index: {}]
  %s2 = inlined_call_operand.hbm [shape: bf16[256,512], index: 2, kind: input, shape index: {}]
  %s3 = inlined_call_operand.hbm [shape: bf16[512,512], index: 3, kind: output, shape index: {}]
  %s4 = sld [smem:[#allocation0]]
  $region53: #{tpu_custom_call.1} parent=0
    _
  %s6 = ssub.s32 1, %s4
  %s7 = scalar_select 0, %s6, %s4
  $region1: #{tpu_custom_call.1} parent=0
    #allocation2 [shape = 'u8[262144]{0}', space=vmem, size = 0x40000, scoped, tag = 'input window, operand 0']
    #allocation3 [shape = 's32[2]{0}', space=sflag, size = 0x8, scoped, tag = 'scoped memory for tpu_custom_call.1']
    #allocation4 [shape = 's32[2]{0}', space=sflag, size = 0x8, scoped, tag = 'scoped memory for tpu_custom_call.1']
    #allocation5 [shape = 'u8[262144]{0}', space=vmem, size = 0x40000, scoped, tag = 'input window, operand 2, single buffered']
    #allocation6 [shape = 's32[1]{0}', space=sflag, size = 0x4, scoped, tag = 'scoped memory for tpu_custom_call.1']
    #allocation7 [shape = 'u8[524288]{0}', space=vmem, size = 0x80000, scoped, tag = 'output window, operand 0']
    %8 = vsyncpa [#allocation3], 0
    %s9 = scalar_lea.sflag [#allocation3], 1
    %10 = vsyncpa %s9, 0
    %11 = vsyncpa [#allocation6], 0
    %12 = vsyncpa [#allocation4], 0
    %s13 = scalar_lea.sflag [#allocation4], 1
    %14 = vsyncpa %s13, 0
    loop: start=0, step=1, limit=4
    $region2: #{tpu_custom_call.1} parent=1 // loop_pre_header
      _
    $region3: #{tpu_custom_call.1} parent=1 // loop_header
      %s16 = sphi 0, %s20
      %p17 = scmp.ge.s32.totalorder %s16, 4
      %s26 = sphi 0, %s28
      %s29 = sphi 0, %s26
      %s30 = sphi 0, %s29
      %s46 = sphi 0, %s30
      %s50 = sphi 0, %s50
      %s52 = sphi 0, %s50
      %s53 = sphi 0, %s52
      %s67 = sphi 0, %s53
      %s71 = sphi 0, %s71
      %s73 = sphi 0, %s71
      %s74 = sphi 0, %s73
      %s88 = sphi 0, %s74
      %s94 = sphi 0, %s96
      %s97 = sphi 0, %s94
      %s98 = sphi 0, %s97
      %s114 = sphi 0, %s98
    $region4: #{tpu_custom_call.1} parent=1 // loop_header_branch
      %19 = sbr.rel (%p17) target = $region8
    $region5: #{tpu_custom_call.1} parent=1 // loop_body
      %s21 = ssub.s32 %s16, 1
      %s22 = ssub.s32 %s16, 2
      %s23 = sadd.s32 %s16, 1
      %s24 = ssub.s32 %s16, %s23
      %p25 = scmp.eq.s32.totalorder %s24, 0
      %s27 = sadd.s32 %s26, 1
      %s28 = scalar_select %p25, %s26, %s27
      %p31 = pneg %p25
      %p32 = scmp.eq.s32.totalorder %s16, 1
      %p33 = por %p31, %p32
      %p34 = scmp.ne.s32.totalorder %s26, %s29
      %p35 = scmp.eq.s32.totalorder %s16, 0
      %p36 = por %p34, %p35
      %p37 = scmp.ne.s32.totalorder %s26, %s29
      %p38 = scmp.eq.s32.totalorder %s21, 1
      %p39 = por %p37, %p38
      %p40 = scmp.ne.s32.totalorder %s29, %s30
      %p41 = scmp.eq.s32.totalorder %s21, 0
      %p42 = por %p40, %p41
      %p43 = scmp.ne.s32.totalorder %s29, %s30
      %p44 = scmp.eq.s32.totalorder %s22, 1
      %p45 = por %p43, %p44
      %p47 = scmp.ne.s32.totalorder %s30, %s46
      %p48 = scmp.eq.s32.totalorder %s22, 0
      %p49 = por %p47, %p48
      %s51 = sadd.s32 %s50, 1
      %p54 = scmp.eq.s32.totalorder %s16, 1
      %p55 = scmp.ne.s32.totalorder %s50, %s52
      %p56 = scmp.eq.s32.totalorder %s16, 0
      %p57 = por %p55, %p56
      %p58 = scmp.ne.s32.totalorder %s50, %s52
      %p59 = scmp.eq.s32.totalorder %s21, 1
      %p60 = por %p58, %p59
      %p61 = scmp.ne.s32.totalorder %s52, %s53
      %p62 = scmp.eq.s32.totalorder %s21, 0
      %p63 = por %p61, %p62
      %p64 = scmp.ne.s32.totalorder %s52, %s53
      %p65 = scmp.eq.s32.totalorder %s22, 1
      %p66 = por %p64, %p65
      %p68 = scmp.ne.s32.totalorder %s53, %s67
      %p69 = scmp.eq.s32.totalorder %s22, 0
      %p70 = por %p68, %p69
      %s72 = sadd.s32 %s71, 1
      %p75 = scmp.eq.s32.totalorder %s16, 1
      %p76 = scmp.ne.s32.totalorder %s71, %s73
      %p77 = scmp.eq.s32.totalorder %s16, 0
      %p78 = por %p76, %p77
      %p79 = scmp.ne.s32.totalorder %s71, %s73
      %p80 = scmp.eq.s32.totalorder %s21, 1
      %p81 = por %p79, %p80
      %p82 = scmp.ne.s32.totalorder %s73, %s74
      %p83 = scmp.eq.s32.totalorder %s21, 0
      %p84 = por %p82, %p83
      %p85 = scmp.ne.s32.totalorder %s73, %s74
      %p86 = scmp.eq.s32.totalorder %s22, 1
      %p87 = por %p85, %p86
      %p89 = scmp.ne.s32.totalorder %s74, %s88
      %p90 = scmp.eq.s32.totalorder %s22, 0
      %p91 = por %p89, %p90
      %s92 = ssub.s32 %s16, %s23
      %p93 = scmp.eq.s32.totalorder %s92, 0
      %s95 = sadd.s32 %s94, 1
      %s96 = scalar_select %p93, %s94, %s95
      %p99 = pneg %p93
      %p100 = scmp.eq.s32.totalorder %s16, 1
      %p101 = por %p99, %p100
      %p102 = scmp.ne.s32.totalorder %s94, %s97
      %p103 = scmp.eq.s32.totalorder %s16, 0
      %p104 = por %p102, %p103
      %p105 = scmp.ne.s32.totalorder %s94, %s97
      %p106 = scmp.eq.s32.totalorder %s21, 1
      %p107 = por %p105, %p106
      %p108 = scmp.ne.s32.totalorder %s97, %s98
      %p109 = scmp.eq.s32.totalorder %s21, 0
      %p110 = por %p108, %p109
      %p111 = scmp.ne.s32.totalorder %s97, %s98
      %p112 = scmp.eq.s32.totalorder %s22, 1
      %p113 = por %p111, %p112
      %p115 = scmp.ne.s32.totalorder %s98, %s114
      %p116 = scmp.eq.s32.totalorder %s22, 0
      %p117 = por %p115, %p116
      %p118 = scmp.le.s32.totalorder 1, %s16
      %p119 = scmp.lt.s32.totalorder %s16, 3
      %p120 = pnand %p118, %p119
      %p121 = pneg %p120
      // Predicated region
      $region9: #{tpu_custom_call.1} parent=5 // pred_check
        _
      $region10: #{tpu_custom_call.1} parent=5 // pred_check_branch
        %123 = sbr.rel (%p120) target = $region12
      $region11: #{tpu_custom_call.1} parent=5 // pred_region
        %s124 = ssub.s32 %s16, 1
        // Predicated region
        $region13: #{tpu_custom_call.1} parent=11 // pred_check
          %p125 = pneg %p63
        $region14: #{tpu_custom_call.1} parent=11 // pred_check_branch
          %127 = sbr.rel (%p125) target = $region16
        $region15: #{tpu_custom_call.1} parent=11 // pred_region
          _
        $region16: #{tpu_custom_call.1} parent=11 // pred_fallthru
          _
        // Predicated region
        $region17: #{tpu_custom_call.1} parent=11 // pred_check
          %p128 = pneg %p84
        $region18: #{tpu_custom_call.1} parent=11 // pred_check_branch
          %130 = sbr.rel (%p128) target = $region20
        $region19: #{tpu_custom_call.1} parent=11 // pred_region
          %s132 = ssub.s32 8192, 8192
          %133 = vsyncadd [#allocation6], %s132
          %s134 = sshll.u32 [#allocation5], 4
          %s135 = int_to_ptr.vmem [resolvable:$true] %s134
          %140 = dma.hbm_to_vmem [thread:$0]  %s2, 8192, %s135, [#allocation6], 256, 256, 16
        $region20: #{tpu_custom_call.1} parent=11 // pred_fallthru
          _
      $region12: #{tpu_custom_call.1} parent=5 // pred_fallthru
        _
      %p141 = scmp.lt.s32.totalorder %s16, 2
      // Predicated region
      $region21: #{tpu_custom_call.1} parent=5 // pred_check
        %p142 = pneg %p141
      $region22: #{tpu_custom_call.1} parent=5 // pred_check_branch
        %144 = sbr.rel (%p142) target = $region24
      $region23: #{tpu_custom_call.1} parent=5 // pred_region
        // Predicated region
        $region25: #{tpu_custom_call.1} parent=23 // pred_check
          %p145 = pneg %p36
        $region26: #{tpu_custom_call.1} parent=23 // pred_check_branch
          %147 = sbr.rel (%p145) target = $region28
        $region27: #{tpu_custom_call.1} parent=23 // pred_region
          %s148 = sand.u32 %s26, 1
          %s149 = scalar_lea.sflag [#allocation3], %s148
          %s150 = sand.u32 %s26, 1
          %s151 = smul.addr %s150, 256
          %s152 = scalar_lea.vmem [#allocation2], %s151
          %s153 = smul.u32 32, %s16
          %s155 = ssub.s32 4096, 4096
          %156 = vsyncadd %s149, %s155
          %s157 = smul.addr %s153, 2
          %s158 = smul.addr %s157, 64
          %s159 = scalar_lea.hbm %s0, %s158
          %s160 = sshll.u32 %s152, 4
          %s161 = int_to_ptr.vmem [resolvable:$true] %s160
          %166 = dma.hbm_to_vmem [thread:$0]  %s159, 4096, %s161, %s149, 128, 128, 8
        $region28: #{tpu_custom_call.1} parent=23 // pred_fallthru
          _
      $region24: #{tpu_custom_call.1} parent=5 // pred_fallthru
        _
      %p167 = scmp.le.s32.totalorder 1, %s16
      %p168 = scmp.lt.s32.totalorder %s16, 3
      %p169 = pnand %p167, %p168
      %p170 = pneg %p169
      // Predicated region
      $region29: #{tpu_custom_call.1} parent=5 // pred_check
        _
      $region30: #{tpu_custom_call.1} parent=5 // pred_check_branch
        %172 = sbr.rel (%p169) target = $region32
      $region31: #{tpu_custom_call.1} parent=5 // pred_region
        %s173 = ssub.s32 %s16, 1
        %s174 = sand.u32 %s29, 1
        %s175 = scalar_lea.sflag [#allocation3], %s174
        %s176 = sand.u32 %s29, 1
        %s177 = smul.addr %s176, 256
        %s178 = scalar_lea.vmem [#allocation2], %s177
        // Predicated region
        $region33: #{tpu_custom_call.1} parent=31 // pred_check
          %p179 = pneg %p42
        $region34: #{tpu_custom_call.1} parent=31 // pred_check_branch
          %181 = sbr.rel (%p179) target = $region36
        $region35: #{tpu_custom_call.1} parent=31 // pred_region
          %182 = dma.done %s175, 4096
        $region36: #{tpu_custom_call.1} parent=31 // pred_fallthru
          _
        // Predicated region
        $region37: #{tpu_custom_call.1} parent=31 // pred_check
          %p183 = pneg %p84
        $region38: #{tpu_custom_call.1} parent=31 // pred_check_branch
          %185 = sbr.rel (%p183) target = $region40
        $region39: #{tpu_custom_call.1} parent=31 // pred_region
          %186 = dma.done [#allocation6], 8192
        $region40: #{tpu_custom_call.1} parent=31 // pred_fallthru
          _
        %s187 = sand.u32 %s29, 1
        %s188 = scalar_lea.sflag [#allocation3], %s187
        %s189 = sand.u32 %s29, 1
        %s190 = smul.addr %s189, 256
        %s191 = scalar_lea.vmem [#allocation2], %s190
        %p192 = pneg %p42
        %p193 = pneg %p39
        %p194 = pneg %p63
        %p195 = pneg %p60
        %p196 = pneg %p84
        %p197 = pneg %p81
        %p198 = pneg %p110
        %p199 = pneg %p107
        %s200 = sand.u32 %s97, 1
        %s201 = scalar_lea.sflag [#allocation4], %s200
        %s202 = sand.u32 %s97, 1
        %s203 = smul.addr %s202, 512
        %s204 = scalar_lea.vmem [#allocation7], %s203
        %s205 = smul.u32 32, %s21
        %s206 = smul.u32 32, %s21
        %v207 = vld [vmem:[%s178] sm:$0xff]
        %v208 = vld [vmem:[%s178 + $0x8] sm:$0xff]
        %v209 = vld [vmem:[%s178 + $0x10] sm:$0xff]
        %v210 = vld [vmem:[%s178 + $0x18] sm:$0xff]
        %v211 = vld [vmem:[%s178 + $0x20] sm:$0xff]
        %v212 = vld [vmem:[%s178 + $0x28] sm:$0xff]
        %v213 = vld [vmem:[%s178 + $0x30] sm:$0xff]
        %v214 = vld [vmem:[%s178 + $0x38] sm:$0xff]
        %v215 = vld [vmem:[%s178 + $0x40] sm:$0xff]
        %v216 = vld [vmem:[%s178 + $0x48] sm:$0xff]
        %v217 = vld [vmem:[%s178 + $0x50] sm:$0xff]
        %v218 = vld [vmem:[%s178 + $0x58] sm:$0xff]
        %v219 = vld [vmem:[%s178 + $0x60] sm:$0xff]
        %v220 = vld [vmem:[%s178 + $0x68] sm:$0xff]
        %v221 = vld [vmem:[%s178 + $0x70] sm:$0xff]
        %v222 = vld [vmem:[%s178 + $0x78] sm:$0xff]
        %v223 = vld [vmem:[%s178 + $0x80] sm:$0xff]
        %v224 = vld [vmem:[%s178 + $0x88] sm:$0xff]
        %v225 = vld [vmem:[%s178 + $0x90] sm:$0xff]
        %v226 = vld [vmem:[%s178 + $0x98] sm:$0xff]
        %v227 = vld [vmem:[%s178 + $0xa0] sm:$0xff]
        %v228 = vld [vmem:[%s178 + $0xa8] sm:$0xff]
        %v229 = vld [vmem:[%s178 + $0xb0] sm:$0xff]
        %v230 = vld [vmem:[%s178 + $0xb8] sm:$0xff]
        %v231 = vld [vmem:[%s178 + $0xc0] sm:$0xff]
        %v232 = vld [vmem:[%s178 + $0xc8] sm:$0xff]
        %v233 = vld [vmem:[%s178 + $0xd0] sm:$0xff]
        %v234 = vld [vmem:[%s178 + $0xd8] sm:$0xff]
        %v235 = vld [vmem:[%s178 + $0xe0] sm:$0xff]
        %v236 = vld [vmem:[%s178 + $0xe8] sm:$0xff]
        %v237 = vld [vmem:[%s178 + $0xf0] sm:$0xff]
        %v238 = vld [vmem:[%s178 + $0xf8] sm:$0xff]
        %v239 = vunpack.c.l.bf16 %v207
        %v240 = vunpack.c.h.bf16 %v207
        %v241 = vunpack.c.l.bf16 %v208
        %v242 = vunpack.c.h.bf16 %v208
        %v243 = vunpack.c.l.bf16 %v209
        %v244 = vunpack.c.h.bf16 %v209
        %v245 = vunpack.c.l.bf16 %v210
        %v246 = vunpack.c.h.bf16 %v210
        %v247 = vunpack.c.l.bf16 %v211
        %v248 = vunpack.c.h.bf16 %v211
        %v249 = vunpack.c.l.bf16 %v212
        %v250 = vunpack.c.h.bf16 %v212
        %v251 = vunpack.c.l.bf16 %v213
        %v252 = vunpack.c.h.bf16 %v213
        %v253 = vunpack.c.l.bf16 %v214
        %v254 = vunpack.c.h.bf16 %v214
        %v255 = vunpack.c.l.bf16 %v215
        %v256 = vunpack.c.h.bf16 %v215
        %v257 = vunpack.c.l.bf16 %v216
        %v258 = vunpack.c.h.bf16 %v216
        %v259 = vunpack.c.l.bf16 %v217
        %v260 = vunpack.c.h.bf16 %v217
        %v261 = vunpack.c.l.bf16 %v218
        %v262 = vunpack.c.h.bf16 %v218
        %v263 = vunpack.c.l.bf16 %v219
        %v264 = vunpack.c.h.bf16 %v219
        %v265 = vunpack.c.l.bf16 %v220
        %v266 = vunpack.c.h.bf16 %v220
        %v267 = vunpack.c.l.bf16 %v221
        %v268 = vunpack.c.h.bf16 %v221
        %v269 = vunpack.c.l.bf16 %v222
        %v270 = vunpack.c.h.bf16 %v222
        %v271 = vunpack.c.l.bf16 %v223
        %v272 = vunpack.c.h.bf16 %v223
        %v273 = vunpack.c.l.bf16 %v224
        %v274 = vunpack.c.h.bf16 %v224
        %v275 = vunpack.c.l.bf16 %v225
        %v276 = vunpack.c.h.bf16 %v225
        %v277 = vunpack.c.l.bf16 %v226
        %v278 = vunpack.c.h.bf16 %v226
        %v279 = vunpack.c.l.bf16 %v227
        %v280 = vunpack.c.h.bf16 %v227
        %v281 = vunpack.c.l.bf16 %v228
        %v282 = vunpack.c.h.bf16 %v228
        %v283 = vunpack.c.l.bf16 %v229
        %v284 = vunpack.c.h.bf16 %v229
        %v285 = vunpack.c.l.bf16 %v230
        %v286 = vunpack.c.h.bf16 %v230
        %v287 = vunpack.c.l.bf16 %v231
        %v288 = vunpack.c.h.bf16 %v231
        %v289 = vunpack.c.l.bf16 %v232
        %v290 = vunpack.c.h.bf16 %v232
        %v291 = vunpack.c.l.bf16 %v233
        %v292 = vunpack.c.h.bf16 %v233
        %v293 = vunpack.c.l.bf16 %v234
        %v294 = vunpack.c.h.bf16 %v234
        %v295 = vunpack.c.l.bf16 %v235
        %v296 = vunpack.c.h.bf16 %v235
        %v297 = vunpack.c.l.bf16 %v236
        %v298 = vunpack.c.h.bf16 %v236
        %v299 = vunpack.c.l.bf16 %v237
        %v300 = vunpack.c.h.bf16 %v237
        %v301 = vunpack.c.l.bf16 %v238
        %v302 = vunpack.c.h.bf16 %v238
        %v303 = vmul.f32 %v239, %v239
        %v304 = vmul.f32 %v240, %v240
        %v305 = vmul.f32 %v241, %v241
        %v306 = vmul.f32 %v242, %v242
        %v307 = vmul.f32 %v243, %v243
        %v308 = vmul.f32 %v244, %v244
        %v309 = vmul.f32 %v245, %v245
        %v310 = vmul.f32 %v246, %v246
        %v311 = vmul.f32 %v247, %v247
        %v312 = vmul.f32 %v248, %v248
        %v313 = vmul.f32 %v249, %v249
        %v314 = vmul.f32 %v250, %v250
        %v315 = vmul.f32 %v251, %v251
        %v316 = vmul.f32 %v252, %v252
        %v317 = vmul.f32 %v253, %v253
        %v318 = vmul.f32 %v254, %v254
        %v319 = vmul.f32 %v255, %v255
        %v320 = vmul.f32 %v256, %v256
        %v321 = vmul.f32 %v257, %v257
        %v322 = vmul.f32 %v258, %v258
        %v323 = vmul.f32 %v259, %v259
        %v324 = vmul.f32 %v260, %v260
        %v325 = vmul.f32 %v261, %v261
        %v326 = vmul.f32 %v262, %v262
        %v327 = vmul.f32 %v263, %v263
        %v328 = vmul.f32 %v264, %v264
        %v329 = vmul.f32 %v265, %v265
        %v330 = vmul.f32 %v266, %v266
        %v331 = vmul.f32 %v267, %v267
        %v332 = vmul.f32 %v268, %v268
        %v333 = vmul.f32 %v269, %v269
        %v334 = vmul.f32 %v270, %v270
        %v335 = vmul.f32 %v271, %v271
        %v336 = vmul.f32 %v272, %v272
        %v337 = vmul.f32 %v273, %v273
        %v338 = vmul.f32 %v274, %v274
        %v339 = vmul.f32 %v275, %v275
        %v340 = vmul.f32 %v276, %v276
        %v341 = vmul.f32 %v277, %v277
        %v342 = vmul.f32 %v278, %v278
        %v343 = vmul.f32 %v279, %v279
        %v344 = vmul.f32 %v280, %v280
        %v345 = vmul.f32 %v281, %v281
        %v346 = vmul.f32 %v282, %v282
        %v347 = vmul.f32 %v283, %v283
        %v348 = vmul.f32 %v284, %v284
        %v349 = vmul.f32 %v285, %v285
        %v350 = vmul.f32 %v286, %v286
        %v351 = vmul.f32 %v287, %v287
        %v352 = vmul.f32 %v288, %v288
        %v353 = vmul.f32 %v289, %v289
        %v354 = vmul.f32 %v290, %v290
        %v355 = vmul.f32 %v291, %v291
        %v356 = vmul.f32 %v292, %v292
        %v357 = vmul.f32 %v293, %v293
        %v358 = vmul.f32 %v294, %v294
        %v359 = vmul.f32 %v295, %v295
        %v360 = vmul.f32 %v296, %v296
        %v361 = vmul.f32 %v297, %v297
        %v362 = vmul.f32 %v298, %v298
        %v363 = vmul.f32 %v299, %v299
        %v364 = vmul.f32 %v300, %v300
        %v365 = vmul.f32 %v301, %v301
        %v366 = vmul.f32 %v302, %v302
        %v367 = vadd.f32 %v303, %v304
        %368 = vadd.xlane.f32.xlu0 %v367
        %v369 = vpop.xlane.xlu0 %368
        %v370 = vadd.f32 %v305, %v306
        %371 = vadd.xlane.f32.xlu0 %v370
        %v372 = vpop.xlane.xlu0 %371
        %v373 = vadd.f32 %v307, %v308
        %374 = vadd.xlane.f32.xlu0 %v373
        %v375 = vpop.xlane.xlu0 %374
        %v376 = vadd.f32 %v309, %v310
        %377 = vadd.xlane.f32.xlu0 %v376
        %v378 = vpop.xlane.xlu0 %377
        %v379 = vadd.f32 %v311, %v312
        %380 = vadd.xlane.f32.xlu0 %v379
        %v381 = vpop.xlane.xlu0 %380
        %v382 = vadd.f32 %v313, %v314
        %383 = vadd.xlane.f32.xlu0 %v382
        %v384 = vpop.xlane.xlu0 %383
        %v385 = vadd.f32 %v315, %v316
        %386 = vadd.xlane.f32.xlu0 %v385
        %v387 = vpop.xlane.xlu0 %386
        %v388 = vadd.f32 %v317, %v318
        %389 = vadd.xlane.f32.xlu0 %v388
        %v390 = vpop.xlane.xlu0 %389
        %v391 = vadd.f32 %v319, %v320
        %392 = vadd.xlane.f32.xlu0 %v391
        %v393 = vpop.xlane.xlu0 %392
        %v394 = vadd.f32 %v321, %v322
        %395 = vadd.xlane.f32.xlu0 %v394
        %v396 = vpop.xlane.xlu0 %395
        %v397 = vadd.f32 %v323, %v324
        %398 = vadd.xlane.f32.xlu0 %v397
        %v399 = vpop.xlane.xlu0 %398
        %v400 = vadd.f32 %v325, %v326
        %401 = vadd.xlane.f32.xlu0 %v400
        %v402 = vpop.xlane.xlu0 %401
        %v403 = vadd.f32 %v327, %v328
        %404 = vadd.xlane.f32.xlu0 %v403
        %v405 = vpop.xlane.xlu0 %404
        %v406 = vadd.f32 %v329, %v330
        %407 = vadd.xlane.f32.xlu0 %v406
        %v408 = vpop.xlane.xlu0 %407
        %v409 = vadd.f32 %v331, %v332
        %410 = vadd.xlane.f32.xlu0 %v409
        %v411 = vpop.xlane.xlu0 %410
        %v412 = vadd.f32 %v333, %v334
        %413 = vadd.xlane.f32.xlu0 %v412
        %v414 = vpop.xlane.xlu0 %413
        %v415 = vadd.f32 %v335, %v336
        %416 = vadd.xlane.f32.xlu0 %v415
        %v417 = vpop.xlane.xlu0 %416
        %v418 = vadd.f32 %v337, %v338
        %419 = vadd.xlane.f32.xlu0 %v418
        %v420 = vpop.xlane.xlu0 %419
        %v421 = vadd.f32 %v339, %v340
        %422 = vadd.xlane.f32.xlu0 %v421
        %v423 = vpop.xlane.xlu0 %422
        %v424 = vadd.f32 %v341, %v342
        %425 = vadd.xlane.f32.xlu0 %v424
        %v426 = vpop.xlane.xlu0 %425
        %v427 = vadd.f32 %v343, %v344
        %428 = vadd.xlane.f32.xlu0 %v427
        %v429 = vpop.xlane.xlu0 %428
        %v430 = vadd.f32 %v345, %v346
        %431 = vadd.xlane.f32.xlu0 %v430
        %v432 = vpop.xlane.xlu0 %431
        %v433 = vadd.f32 %v347, %v348
        %434 = vadd.xlane.f32.xlu0 %v433
        %v435 = vpop.xlane.xlu0 %434
        %v436 = vadd.f32 %v349, %v350
        %437 = vadd.xlane.f32.xlu0 %v436
        %v438 = vpop.xlane.xlu0 %437
        %v439 = vadd.f32 %v351, %v352
        %440 = vadd.xlane.f32.xlu0 %v439
        %v441 = vpop.xlane.xlu0 %440
        %v442 = vadd.f32 %v353, %v354
        %443 = vadd.xlane.f32.xlu0 %v442
        %v444 = vpop.xlane.xlu0 %443
        %v445 = vadd.f32 %v355, %v356
        %446 = vadd.xlane.f32.xlu0 %v445
        %v447 = vpop.xlane.xlu0 %446
        %v448 = vadd.f32 %v357, %v358
        %449 = vadd.xlane.f32.xlu0 %v448
        %v450 = vpop.xlane.xlu0 %449
        %v451 = vadd.f32 %v359, %v360
        %452 = vadd.xlane.f32.xlu0 %v451
        %v453 = vpop.xlane.xlu0 %452
        %v454 = vadd.f32 %v361, %v362
        %455 = vadd.xlane.f32.xlu0 %v454
        %v456 = vpop.xlane.xlu0 %455
        %v457 = vadd.f32 %v363, %v364
        %458 = vadd.xlane.f32.xlu0 %v457
        %v459 = vpop.xlane.xlu0 %458
        %v460 = vadd.f32 %v365, %v366
        %461 = vadd.xlane.f32.xlu0 %v460
        %v462 = vpop.xlane.xlu0 %461
        %v463 = vrcp.pop 256.0
        %v464 = vmul.f32 %v369, %v463
        %v465 = vmul.f32 %v372, %v463
        %v466 = vmul.f32 %v375, %v463
        %v467 = vmul.f32 %v378, %v463
        %v468 = vmul.f32 %v381, %v463
        %v469 = vmul.f32 %v384, %v463
        %v470 = vmul.f32 %v387, %v463
        %v471 = vmul.f32 %v390, %v463
        %v472 = vmul.f32 %v393, %v463
        %v473 = vmul.f32 %v396, %v463
        %v474 = vmul.f32 %v399, %v463
        %v475 = vmul.f32 %v402, %v463
        %v476 = vmul.f32 %v405, %v463
        %v477 = vmul.f32 %v408, %v463
        %v478 = vmul.f32 %v411, %v463
        %v479 = vmul.f32 %v414, %v463
        %v480 = vmul.f32 %v417, %v463
        %v481 = vmul.f32 %v420, %v463
        %v482 = vmul.f32 %v423, %v463
        %v483 = vmul.f32 %v426, %v463
        %v484 = vmul.f32 %v429, %v463
        %v485 = vmul.f32 %v432, %v463
        %v486 = vmul.f32 %v435, %v463
        %v487 = vmul.f32 %v438, %v463
        %v488 = vmul.f32 %v441, %v463
        %v489 = vmul.f32 %v444, %v463
        %v490 = vmul.f32 %v447, %v463
        %v491 = vmul.f32 %v450, %v463
        %v492 = vmul.f32 %v453, %v463
        %v493 = vmul.f32 %v456, %v463
        %v494 = vmul.f32 %v459, %v463
        %v495 = vmul.f32 %v462, %v463
        %v496 = vadd.f32 %v464, 1e-05
        %v497 = vadd.f32 %v465, 1e-05
        %v498 = vadd.f32 %v466, 1e-05
        %v499 = vadd.f32 %v467, 1e-05
        %v500 = vadd.f32 %v468, 1e-05
        %v501 = vadd.f32 %v469, 1e-05
        %v502 = vadd.f32 %v470, 1e-05
        %v503 = vadd.f32 %v471, 1e-05
        %v504 = vadd.f32 %v472, 1e-05
        %v505 = vadd.f32 %v473, 1e-05
        %v506 = vadd.f32 %v474, 1e-05
        %v507 = vadd.f32 %v475, 1e-05
        %v508 = vadd.f32 %v476, 1e-05
        %v509 = vadd.f32 %v477, 1e-05
        %v510 = vadd.f32 %v478, 1e-05
        %v511 = vadd.f32 %v479, 1e-05
        %v512 = vadd.f32 %v480, 1e-05
        %v513 = vadd.f32 %v481, 1e-05
        %v514 = vadd.f32 %v482, 1e-05
        %v515 = vadd.f32 %v483, 1e-05
        %v516 = vadd.f32 %v484, 1e-05
        %v517 = vadd.f32 %v485, 1e-05
        %v518 = vadd.f32 %v486, 1e-05
        %v519 = vadd.f32 %v487, 1e-05
        %v520 = vadd.f32 %v488, 1e-05
        %v521 = vadd.f32 %v489, 1e-05
        %v522 = vadd.f32 %v490, 1e-05
        %v523 = vadd.f32 %v491, 1e-05
        %v524 = vadd.f32 %v492, 1e-05
        %v525 = vadd.f32 %v493, 1e-05
        %v526 = vadd.f32 %v494, 1e-05
        %v527 = vadd.f32 %v495, 1e-05
        %v528 = vrsqrt.pop %v496
        %v529 = vrsqrt.pop %v497
        %v530 = vrsqrt.pop %v498
        %v531 = vrsqrt.pop %v499
        %v532 = vrsqrt.pop %v500
        %v533 = vrsqrt.pop %v501
        %v534 = vrsqrt.pop %v502
        %v535 = vrsqrt.pop %v503
        %v536 = vrsqrt.pop %v504
        %v537 = vrsqrt.pop %v505
        %v538 = vrsqrt.pop %v506
        %v539 = vrsqrt.pop %v507
        %v540 = vrsqrt.pop %v508
        %v541 = vrsqrt.pop %v509
        %v542 = vrsqrt.pop %v510
        %v543 = vrsqrt.pop %v511
        %v544 = vrsqrt.pop %v512
        %v545 = vrsqrt.pop %v513
        %v546 = vrsqrt.pop %v514
        %v547 = vrsqrt.pop %v515
        %v548 = vrsqrt.pop %v516
        %v549 = vrsqrt.pop %v517
        %v550 = vrsqrt.pop %v518
        %v551 = vrsqrt.pop %v519
        %v552 = vrsqrt.pop %v520
        %v553 = vrsqrt.pop %v521
        %v554 = vrsqrt.pop %v522
        %v555 = vrsqrt.pop %v523
        %v556 = vrsqrt.pop %v524
        %v557 = vrsqrt.pop %v525
        %v558 = vrsqrt.pop %v526
        %v559 = vrsqrt.pop %v527
        %v560 = vmul.f32 %v239, %v528
        %v561 = vmul.f32 %v240, %v528
        %v562 = vmul.f32 %v241, %v529
        %v563 = vmul.f32 %v242, %v529
        %v564 = vmul.f32 %v243, %v530
        %v565 = vmul.f32 %v244, %v530
        %v566 = vmul.f32 %v245, %v531
        %v567 = vmul.f32 %v246, %v531
        %v568 = vmul.f32 %v247, %v532
        %v569 = vmul.f32 %v248, %v532
        %v570 = vmul.f32 %v249, %v533
        %v571 = vmul.f32 %v250, %v533
        %v572 = vmul.f32 %v251, %v534
        %v573 = vmul.f32 %v252, %v534
        %v574 = vmul.f32 %v253, %v535
        %v575 = vmul.f32 %v254, %v535
        %v576 = vmul.f32 %v255, %v536
        %v577 = vmul.f32 %v256, %v536
        %v578 = vmul.f32 %v257, %v537
        %v579 = vmul.f32 %v258, %v537
        %v580 = vmul.f32 %v259, %v538
        %v581 = vmul.f32 %v260, %v538
        %v582 = vmul.f32 %v261, %v539
        %v583 = vmul.f32 %v262, %v539
        %v584 = vmul.f32 %v263, %v540
        %v585 = vmul.f32 %v264, %v540
        %v586 = vmul.f32 %v265, %v541
        %v587 = vmul.f32 %v266, %v541
        %v588 = vmul.f32 %v267, %v542
        %v589 = vmul.f32 %v268, %v542
        %v590 = vmul.f32 %v269, %v543
        %v591 = vmul.f32 %v270, %v543
        %v592 = vmul.f32 %v271, %v544
        %v593 = vmul.f32 %v272, %v544
        %v594 = vmul.f32 %v273, %v545
        %v595 = vmul.f32 %v274, %v545
        %v596 = vmul.f32 %v275, %v546
        %v597 = vmul.f32 %v276, %v546
        %v598 = vmul.f32 %v277, %v547
        %v599 = vmul.f32 %v278, %v547
        %v600 = vmul.f32 %v279, %v548
        %v601 = vmul.f32 %v280, %v548
        %v602 = vmul.f32 %v281, %v549
        %v603 = vmul.f32 %v282, %v549
        %v604 = vmul.f32 %v283, %v550
        %v605 = vmul.f32 %v284, %v550
        %v606 = vmul.f32 %v285, %v551
        %v607 = vmul.f32 %v286, %v551
        %v608 = vmul.f32 %v287, %v552
        %v609 = vmul.f32 %v288, %v552
        %v610 = vmul.f32 %v289, %v553
        %v611 = vmul.f32 %v290, %v553
        %v612 = vmul.f32 %v291, %v554
        %v613 = vmul.f32 %v292, %v554
        %v614 = vmul.f32 %v293, %v555
        %v615 = vmul.f32 %v294, %v555
        %v616 = vmul.f32 %v295, %v556
        %v617 = vmul.f32 %v296, %v556
        %v618 = vmul.f32 %v297, %v557
        %v619 = vmul.f32 %v298, %v557
        %v620 = vmul.f32 %v299, %v558
        %v621 = vmul.f32 %v300, %v558
        %v622 = vmul.f32 %v301, %v559
        %v623 = vmul.f32 %v302, %v559
        %v624 = vld [vmem:[%s1] sm:$0x3]
        %v625 = vunpack.c.l.bf16 %v624
        %v627 = vlaneseq
        %v628 = vshrl.u32 %v627, 7
        %v629 = vsub.s32 0, %v628
        %v630 = vrot.slane %v625, %v629
        %v631 = vlaneseq
        %v632 = vshrl.u32 %v631, 7
        %v633 = vsub.s32 2, %v632
        %v634 = vrot.slane %v625, %v633
        %v637 = vlaneseq
        %v638 = vshrl.u32 %v637, 7
        %v639 = vsub.s32 0, %v638
        %v640 = vrot.slane %v630, %v639
        %v641 = vlaneseq
        %v642 = vshrl.u32 %v641, 7
        %v643 = vsub.s32 0, %v642
        %v644 = vrot.slane %v634, %v643
        %v645 = vmul.f32 %v560, %v640
        %v646 = vmul.f32 %v561, %v644
        %v647 = vmul.f32 %v562, %v640
        %v648 = vmul.f32 %v563, %v644
        %v649 = vmul.f32 %v564, %v640
        %v650 = vmul.f32 %v565, %v644
        %v651 = vmul.f32 %v566, %v640
        %v652 = vmul.f32 %v567, %v644
        %v653 = vmul.f32 %v568, %v640
        %v654 = vmul.f32 %v569, %v644
        %v655 = vmul.f32 %v570, %v640
        %v656 = vmul.f32 %v571, %v644
        %v657 = vmul.f32 %v572, %v640
        %v658 = vmul.f32 %v573, %v644
        %v659 = vmul.f32 %v574, %v640
        %v660 = vmul.f32 %v575, %v644
        %v661 = vmul.f32 %v576, %v640
        %v662 = vmul.f32 %v577, %v644
        %v663 = vmul.f32 %v578, %v640
        %v664 = vmul.f32 %v579, %v644
        %v665 = vmul.f32 %v580, %v640
        %v666 = vmul.f32 %v581, %v644
        %v667 = vmul.f32 %v582, %v640
        %v668 = vmul.f32 %v583, %v644
        %v669 = vmul.f32 %v584, %v640
        %v670 = vmul.f32 %v585, %v644
        %v671 = vmul.f32 %v586, %v640
        %v672 = vmul.f32 %v587, %v644
        %v673 = vmul.f32 %v588, %v640
        %v674 = vmul.f32 %v589, %v644
        %v675 = vmul.f32 %v590, %v640
        %v676 = vmul.f32 %v591, %v644
        %v677 = vmul.f32 %v592, %v640
        %v678 = vmul.f32 %v593, %v644
        %v679 = vmul.f32 %v594, %v640
        %v680 = vmul.f32 %v595, %v644
        %v681 = vmul.f32 %v596, %v640
        %v682 = vmul.f32 %v597, %v644
        %v683 = vmul.f32 %v598, %v640
        %v684 = vmul.f32 %v599, %v644
        %v685 = vmul.f32 %v600, %v640
        %v686 = vmul.f32 %v601, %v644
        %v687 = vmul.f32 %v602, %v640
        %v688 = vmul.f32 %v603, %v644
        %v689 = vmul.f32 %v604, %v640
        %v690 = vmul.f32 %v605, %v644
        %v691 = vmul.f32 %v606, %v640
        %v692 = vmul.f32 %v607, %v644
        %v693 = vmul.f32 %v608, %v640
        %v694 = vmul.f32 %v609, %v644
        %v695 = vmul.f32 %v610, %v640
        %v696 = vmul.f32 %v611, %v644
        %v697 = vmul.f32 %v612, %v640
        %v698 = vmul.f32 %v613, %v644
        %v699 = vmul.f32 %v614, %v640
        %v700 = vmul.f32 %v615, %v644
        %v701 = vmul.f32 %v616, %v640
        %v702 = vmul.f32 %v617, %v644
        %v703 = vmul.f32 %v618, %v640
        %v704 = vmul.f32 %v619, %v644
        %v705 = vmul.f32 %v620, %v640
        %v706 = vmul.f32 %v621, %v644
        %v707 = vmul.f32 %v622, %v640
        %v708 = vmul.f32 %v623, %v644
        %v709 = vpack.c.bf16 %v647, %v645
        %v710 = vpack.c.bf16 %v648, %v646
        %v711 = vpack.c.bf16 %v651, %v649
        %v712 = vpack.c.bf16 %v652, %v650
        %v713 = vpack.c.bf16 %v655, %v653
        %v714 = vpack.c.bf16 %v656, %v654
        %v715 = vpack.c.bf16 %v659, %v657
        %v716 = vpack.c.bf16 %v660, %v658
        %v717 = vpack.c.bf16 %v663, %v661
        %v718 = vpack.c.bf16 %v664, %v662
        %v719 = vpack.c.bf16 %v667, %v665
        %v720 = vpack.c.bf16 %v668, %v666
        %v721 = vpack.c.bf16 %v671, %v669
        %v722 = vpack.c.bf16 %v672, %v670
        %v723 = vpack.c.bf16 %v675, %v673
        %v724 = vpack.c.bf16 %v676, %v674
        %v725 = vpack.c.bf16 %v679, %v677
        %v726 = vpack.c.bf16 %v680, %v678
        %v727 = vpack.c.bf16 %v683, %v681
        %v728 = vpack.c.bf16 %v684, %v682
        %v729 = vpack.c.bf16 %v687, %v685
        %v730 = vpack.c.bf16 %v688, %v686
        %v731 = vpack.c.bf16 %v691, %v689
        %v732 = vpack.c.bf16 %v692, %v690
        %v733 = vpack.c.bf16 %v695, %v693
        %v734 = vpack.c.bf16 %v696, %v694
        %v735 = vpack.c.bf16 %v699, %v697
        %v736 = vpack.c.bf16 %v700, %v698
        %v737 = vpack.c.bf16 %v703, %v701
        %v738 = vpack.c.bf16 %v704, %v702
        %v739 = vpack.c.bf16 %v707, %v705
        %v740 = vpack.c.bf16 %v708, %v706
        %v741 = vld [vmem:[#allocation5] sm:$0xff]
        %v742 = vld [vmem:[#allocation5 + $0x8] sm:$0xff]
        %v743 = vld [vmem:[#allocation5 + $0x10] sm:$0xff]
        %v744 = vld [vmem:[#allocation5 + $0x18] sm:$0xff]
        %v745 = vld [vmem:[#allocation5 + $0x20] sm:$0xff]
        %v746 = vld [vmem:[#allocation5 + $0x28] sm:$0xff]
        %v747 = vld [vmem:[#allocation5 + $0x30] sm:$0xff]
        %v748 = vld [vmem:[#allocation5 + $0x38] sm:$0xff]
        %v749 = vld [vmem:[#allocation5 + $0x40] sm:$0xff]
        %v750 = vld [vmem:[#allocation5 + $0x48] sm:$0xff]
        %v751 = vld [vmem:[#allocation5 + $0x50] sm:$0xff]
        %v752 = vld [vmem:[#allocation5 + $0x58] sm:$0xff]
        %v753 = vld [vmem:[#allocation5 + $0x60] sm:$0xff]
        %v754 = vld [vmem:[#allocation5 + $0x68] sm:$0xff]
        %v755 = vld [vmem:[#allocation5 + $0x70] sm:$0xff]
        %v756 = vld [vmem:[#allocation5 + $0x78] sm:$0xff]
        %v757 = vld [vmem:[#allocation5 + $0x80] sm:$0xff]
        %v758 = vld [vmem:[#allocation5 + $0x88] sm:$0xff]
        %v759 = vld [vmem:[#allocation5 + $0x90] sm:$0xff]
        %v760 = vld [vmem:[#allocation5 + $0x98] sm:$0xff]
        %v761 = vld [vmem:[#allocation5 + $0xa0] sm:$0xff]
        %v762 = vld [vmem:[#allocation5 + $0xa8] sm:$0xff]
        %v763 = vld [vmem:[#allocation5 + $0xb0] sm:$0xff]
        %v764 = vld [vmem:[#allocation5 + $0xb8] sm:$0xff]
        %v765 = vld [vmem:[#allocation5 + $0xc0] sm:$0xff]
        %v766 = vld [vmem:[#allocation5 + $0xc8] sm:$0xff]
        %v767 = vld [vmem:[#allocation5 + $0xd0] sm:$0xff]
        %v768 = vld [vmem:[#allocation5 + $0xd8] sm:$0xff]
        %v769 = vld [vmem:[#allocation5 + $0xe0] sm:$0xff]
        %v770 = vld [vmem:[#allocation5 + $0xe8] sm:$0xff]
        %v771 = vld [vmem:[#allocation5 + $0xf0] sm:$0xff]
        %v772 = vld [vmem:[#allocation5 + $0xf8] sm:$0xff]
        %v773 = vld [vmem:[#allocation5 + $0x100] sm:$0xff]
        %v774 = vld [vmem:[#allocation5 + $0x108] sm:$0xff]
        %v775 = vld [vmem:[#allocation5 + $0x110] sm:$0xff]
        %v776 = vld [vmem:[#allocation5 + $0x118] sm:$0xff]
        %v777 = vld [vmem:[#allocation5 + $0x120] sm:$0xff]
        %v778 = vld [vmem:[#allocation5 + $0x128] sm:$0xff]
        %v779 = vld [vmem:[#allocation5 + $0x130] sm:$0xff]
        %v780 = vld [vmem:[#allocation5 + $0x138] sm:$0xff]
        %v781 = vld [vmem:[#allocation5 + $0x140] sm:$0xff]
        %v782 = vld [vmem:[#allocation5 + $0x148] sm:$0xff]
        %v783 = vld [vmem:[#allocation5 + $0x150] sm:$0xff]
        %v784 = vld [vmem:[#allocation5 + $0x158] sm:$0xff]
        %v785 = vld [vmem:[#allocation5 + $0x160] sm:$0xff]
        %v786 = vld [vmem:[#allocation5 + $0x168] sm:$0xff]
        %v787 = vld [vmem:[#allocation5 + $0x170] sm:$0xff]
        %v788 = vld [vmem:[#allocation5 + $0x178] sm:$0xff]
        %v789 = vld [vmem:[#allocation5 + $0x180] sm:$0xff]
        %v790 = vld [vmem:[#allocation5 + $0x188] sm:$0xff]
        %v791 = vld [vmem:[#allocation5 + $0x190] sm:$0xff]
        %v792 = vld [vmem:[#allocation5 + $0x198] sm:$0xff]
        %v793 = vld [vmem:[#allocation5 + $0x1a0] sm:$0xff]
        %v794 = vld [vmem:[#allocation5 + $0x1a8] sm:$0xff]
        %v795 = vld [vmem:[#allocation5 + $0x1b0] sm:$0xff]
        %v796 = vld [vmem:[#allocation5 + $0x1b8] sm:$0xff]
        %v797 = vld [vmem:[#allocation5 + $0x1c0] sm:$0xff]
        %v798 = vld [vmem:[#allocation5 + $0x1c8] sm:$0xff]
        %v799 = vld [vmem:[#allocation5 + $0x1d0] sm:$0xff]
        %v800 = vld [vmem:[#allocation5 + $0x1d8] sm:$0xff]
        %v801 = vld [vmem:[#allocation5 + $0x1e0] sm:$0xff]
        %v802 = vld [vmem:[#allocation5 + $0x1e8] sm:$0xff]
        %v803 = vld [vmem:[#allocation5 + $0x1f0] sm:$0xff]
        %v804 = vld [vmem:[#allocation5 + $0x1f8] sm:$0xff]
        %v869 = vunpack.c.l.b16 %v741
        %v870 = vunpack.c.h.b16 %v741
        %v871 = vunpack.c.l.b16 %v742
        %v872 = vunpack.c.h.b16 %v742
        %v873 = vunpack.c.l.b16 %v743
        %v874 = vunpack.c.h.b16 %v743
        %v875 = vunpack.c.l.b16 %v744
        %v876 = vunpack.c.h.b16 %v744
        %v877 = vunpack.c.l.b16 %v745
        %v878 = vunpack.c.h.b16 %v745
        %v879 = vunpack.c.l.b16 %v746
        %v880 = vunpack.c.h.b16 %v746
        %v881 = vunpack.c.l.b16 %v747
        %v882 = vunpack.c.h.b16 %v747
        %v883 = vunpack.c.l.b16 %v748
        %v884 = vunpack.c.h.b16 %v748
        %v885 = vunpack.c.l.b16 %v749
        %v886 = vunpack.c.h.b16 %v749
        %v887 = vunpack.c.l.b16 %v750
        %v888 = vunpack.c.h.b16 %v750
        %v889 = vunpack.c.l.b16 %v751
        %v890 = vunpack.c.h.b16 %v751
        %v891 = vunpack.c.l.b16 %v752
        %v892 = vunpack.c.h.b16 %v752
        %v893 = vunpack.c.l.b16 %v753
        %v894 = vunpack.c.h.b16 %v753
        %v895 = vunpack.c.l.b16 %v754
        %v896 = vunpack.c.h.b16 %v754
        %v897 = vunpack.c.l.b16 %v755
        %v898 = vunpack.c.h.b16 %v755
        %v899 = vunpack.c.l.b16 %v756
        %v900 = vunpack.c.h.b16 %v756
        %v901 = vunpack.c.l.b16 %v757
        %v902 = vunpack.c.h.b16 %v757
        %v903 = vunpack.c.l.b16 %v758
        %v904 = vunpack.c.h.b16 %v758
        %v905 = vunpack.c.l.b16 %v759
        %v906 = vunpack.c.h.b16 %v759
        %v907 = vunpack.c.l.b16 %v760
        %v908 = vunpack.c.h.b16 %v760
        %v909 = vunpack.c.l.b16 %v761
        %v910 = vunpack.c.h.b16 %v761
        %v911 = vunpack.c.l.b16 %v762
        %v912 = vunpack.c.h.b16 %v762
        %v913 = vunpack.c.l.b16 %v763
        %v914 = vunpack.c.h.b16 %v763
        %v915 = vunpack.c.l.b16 %v764
        %v916 = vunpack.c.h.b16 %v764
        %v917 = vunpack.c.l.b16 %v765
        %v918 = vunpack.c.h.b16 %v765
        %v919 = vunpack.c.l.b16 %v766
        %v920 = vunpack.c.h.b16 %v766
        %v921 = vunpack.c.l.b16 %v767
        %v922 = vunpack.c.h.b16 %v767
        %v923 = vunpack.c.l.b16 %v768
        %v924 = vunpack.c.h.b16 %v768
        %v925 = vunpack.c.l.b16 %v769
        %v926 = vunpack.c.h.b16 %v769
        %v927 = vunpack.c.l.b16 %v770
        %v928 = vunpack.c.h.b16 %v770
        %v929 = vunpack.c.l.b16 %v771
        %v930 = vunpack.c.h.b16 %v771
        %v931 = vunpack.c.l.b16 %v772
        %v932 = vunpack.c.h.b16 %v772
        %v933 = vunpack.c.l.b16 %v773
        %v934 = vunpack.c.h.b16 %v773
        %v935 = vunpack.c.l.b16 %v774
        %v936 = vunpack.c.h.b16 %v774
        %v937 = vunpack.c.l.b16 %v775
        %v938 = vunpack.c.h.b16 %v775
        %v939 = vunpack.c.l.b16 %v776
        %v940 = vunpack.c.h.b16 %v776
        %v941 = vunpack.c.l.b16 %v777
        %v942 = vunpack.c.h.b16 %v777
        %v943 = vunpack.c.l.b16 %v778
        %v944 = vunpack.c.h.b16 %v778
        %v945 = vunpack.c.l.b16 %v779
        %v946 = vunpack.c.h.b16 %v779
        %v947 = vunpack.c.l.b16 %v780
        %v948 = vunpack.c.h.b16 %v780
        %v949 = vunpack.c.l.b16 %v781
        %v950 = vunpack.c.h.b16 %v781
        %v951 = vunpack.c.l.b16 %v782
        %v952 = vunpack.c.h.b16 %v782
        %v953 = vunpack.c.l.b16 %v783
        %v954 = vunpack.c.h.b16 %v783
        %v955 = vunpack.c.l.b16 %v784
        %v956 = vunpack.c.h.b16 %v784
        %v957 = vunpack.c.l.b16 %v785
        %v958 = vunpack.c.h.b16 %v785
        %v959 = vunpack.c.l.b16 %v786
        %v960 = vunpack.c.h.b16 %v786
        %v961 = vunpack.c.l.b16 %v787
        %v962 = vunpack.c.h.b16 %v787
        %v963 = vunpack.c.l.b16 %v788
        %v964 = vunpack.c.h.b16 %v788
        %v965 = vunpack.c.l.b16 %v789
        %v966 = vunpack.c.h.b16 %v789
        %v967 = vunpack.c.l.b16 %v790
        %v968 = vunpack.c.h.b16 %v790
        %v969 = vunpack.c.l.b16 %v791
        %v970 = vunpack.c.h.b16 %v791
        %v971 = vunpack.c.l.b16 %v792
        %v972 = vunpack.c.h.b16 %v792
        %v973 = vunpack.c.l.b16 %v793
        %v974 = vunpack.c.h.b16 %v793
        %v975 = vunpack.c.l.b16 %v794
        %v976 = vunpack.c.h.b16 %v794
        %v977 = vunpack.c.l.b16 %v795
        %v978 = vunpack.c.h.b16 %v795
        %v979 = vunpack.c.l.b16 %v796
        %v980 = vunpack.c.h.b16 %v796
        %v981 = vunpack.c.l.b16 %v797
        %v982 = vunpack.c.h.b16 %v797
        %v983 = vunpack.c.l.b16 %v798
        %v984 = vunpack.c.h.b16 %v798
        %v985 = vunpack.c.l.b16 %v799
        %v986 = vunpack.c.h.b16 %v799
        %v987 = vunpack.c.l.b16 %v800
        %v988 = vunpack.c.h.b16 %v800
        %v989 = vunpack.c.l.b16 %v801
        %v990 = vunpack.c.h.b16 %v801
        %v991 = vunpack.c.l.b16 %v802
        %v992 = vunpack.c.h.b16 %v802
        %v993 = vunpack.c.l.b16 %v803
        %v994 = vunpack.c.h.b16 %v803
        %v995 = vunpack.c.l.b16 %v804
        %v996 = vunpack.c.h.b16 %v804
        %v997 = vpack.c.b16 %v873, %v869
        %v998 = vpack.c.b16 %v874, %v870
        %v999 = vpack.c.b16 %v875, %v871
        %v1000 = vpack.c.b16 %v876, %v872
        %v1001 = vpack.c.b16 %v881, %v877
        %v1002 = vpack.c.b16 %v882, %v878
        %v1003 = vpack.c.b16 %v883, %v879
        %v1004 = vpack.c.b16 %v884, %v880
        %v1005 = vpack.c.b16 %v889, %v885
        %v1006 = vpack.c.b16 %v890, %v886
        %v1007 = vpack.c.b16 %v891, %v887
        %v1008 = vpack.c.b16 %v892, %v888
        %v1009 = vpack.c.b16 %v897, %v893
        %v1010 = vpack.c.b16 %v898, %v894
        %v1011 = vpack.c.b16 %v899, %v895
        %v1012 = vpack.c.b16 %v900, %v896
        %v1013 = vpack.c.b16 %v905, %v901
        %v1014 = vpack.c.b16 %v906, %v902
        %v1015 = vpack.c.b16 %v907, %v903
        %v1016 = vpack.c.b16 %v908, %v904
        %v1017 = vpack.c.b16 %v913, %v909
        %v1018 = vpack.c.b16 %v914, %v910
        %v1019 = vpack.c.b16 %v915, %v911
        %v1020 = vpack.c.b16 %v916, %v912
        %v1021 = vpack.c.b16 %v921, %v917
        %v1022 = vpack.c.b16 %v922, %v918
        %v1023 = vpack.c.b16 %v923, %v919
        %v1024 = vpack.c.b16 %v924, %v920
        %v1025 = vpack.c.b16 %v929, %v925
        %v1026 = vpack.c.b16 %v930, %v926
        %v1027 = vpack.c.b16 %v931, %v927
        %v1028 = vpack.c.b16 %v932, %v928
        %v1029 = vpack.c.b16 %v937, %v933
        %v1030 = vpack.c.b16 %v938, %v934
        %v1031 = vpack.c.b16 %v939, %v935
        %v1032 = vpack.c.b16 %v940, %v936
        %v1033 = vpack.c.b16 %v945, %v941
        %v1034 = vpack.c.b16 %v946, %v942
        %v1035 = vpack.c.b16 %v947, %v943
        %v1036 = vpack.c.b16 %v948, %v944
        %v1037 = vpack.c.b16 %v953, %v949
        %v1038 = vpack.c.b16 %v954, %v950
        %v1039 = vpack.c.b16 %v955, %v951
        %v1040 = vpack.c.b16 %v956, %v952
        %v1041 = vpack.c.b16 %v961, %v957
        %v1042 = vpack.c.b16 %v962, %v958
        %v1043 = vpack.c.b16 %v963, %v959
        %v1044 = vpack.c.b16 %v964, %v960
        %v1045 = vpack.c.b16 %v969, %v965
        %v1046 = vpack.c.b16 %v970, %v966
        %v1047 = vpack.c.b16 %v971, %v967
        %v1048 = vpack.c.b16 %v972, %v968
        %v1049 = vpack.c.b16 %v977, %v973
        %v1050 = vpack.c.b16 %v978, %v974
        %v1051 = vpack.c.b16 %v979, %v975
        %v1052 = vpack.c.b16 %v980, %v976
        %v1053 = vpack.c.b16 %v985, %v981
        %v1054 = vpack.c.b16 %v986, %v982
        %v1055 = vpack.c.b16 %v987, %v983
        %v1056 = vpack.c.b16 %v988, %v984
        %v1057 = vpack.c.b16 %v993, %v989
        %v1058 = vpack.c.b16 %v994, %v990
        %v1059 = vpack.c.b16 %v995, %v991
        %v1060 = vpack.c.b16 %v996, %v992
        %1125 = vmatprep.subr.bf16.mxu0 %v998
        %1126 = vmatpush1.bf16.msra.mxu0 %v997
        %1127 = vmatprep.subr.bf16.mxu0 %v1002
        %1128 = vmatpush1.bf16.msra.mxu0 %v1001
        %1129 = vmatprep.subr.bf16.mxu0 %v1006
        %1130 = vmatpush1.bf16.msra.mxu0 %v1005
        %1131 = vmatprep.subr.bf16.mxu0 %v1010
        %1132 = vmatpush1.bf16.msra.mxu0 %v1009
        %1133 = vmatprep.subr.bf16.mxu0 %v1014
        %1134 = vmatpush1.bf16.msra.mxu0 %v1013
        %1135 = vmatprep.subr.bf16.mxu0 %v1018
        %1136 = vmatpush1.bf16.msra.mxu0 %v1017
        %1137 = vmatprep.subr.bf16.mxu0 %v1022
        %1138 = vmatpush1.bf16.msra.mxu0 %v1021
        %1139 = vmatprep.subr.bf16.mxu0 %v1026
        %1140 = vmatpush1.bf16.msra.mxu0 %v1025
        %1141 = vmatprep.subr.bf16.mxu0 %v1030
        %1142 = vmatpush1.bf16.msra.mxu0 %v1029
        %1143 = vmatprep.subr.bf16.mxu0 %v1034
        %1144 = vmatpush1.bf16.msra.mxu0 %v1033
        %1145 = vmatprep.subr.bf16.mxu0 %v1038
        %1146 = vmatpush1.bf16.msra.mxu0 %v1037
        %1147 = vmatprep.subr.bf16.mxu0 %v1042
        %1148 = vmatpush1.bf16.msra.mxu0 %v1041
        %1149 = vmatprep.subr.bf16.mxu0 %v1046
        %1150 = vmatpush1.bf16.msra.mxu0 %v1045
        %1151 = vmatprep.subr.bf16.mxu0 %v1050
        %1152 = vmatpush1.bf16.msra.mxu0 %v1049
        %1153 = vmatprep.subr.bf16.mxu0 %v1054
        %1154 = vmatpush1.bf16.msra.mxu0 %v1053
        %1155 = vmatprep.subr.bf16.mxu0 %v1058
        %1156 = vmatpush1.bf16.msra.mxu0 %v1057
        %1157 = vmatprep.mubr.bf16.mxu0 %v710
        %1158 = vmatmul.mubr.bf16.gmra.mrb[0].mxu0 %v709
        %v1159 = vpop.f32.mrb[0].mxu0
        %v1160 = vadd.f32 0.0, %v1159
        %v1161 = vpop.f32.mrb[0].mxu0
        %v1162 = vadd.f32 0.0, %v1161
        %v1163 = vpop.f32.mrb[0].mxu0
        %v1164 = vadd.f32 0.0, %v1163
        %v1165 = vpop.f32.mrb[0].mxu0
        %v1166 = vadd.f32 0.0, %v1165
        %1167 = vmatprep.mubr.bf16.mxu0 %v712
        %1168 = vmatmul.mubr.bf16.gmra.mrb[0].mxu0 %v711
        %v1169 = vpop.f32.mrb[0].mxu0
        %v1170 = vadd.f32 0.0, %v1169
        %v1171 = vpop.f32.mrb[0].mxu0
        %v1172 = vadd.f32 0.0, %v1171
        %v1173 = vpop.f32.mrb[0].mxu0
        %v1174 = vadd.f32 0.0, %v1173
        %v1175 = vpop.f32.mrb[0].mxu0
        %v1176 = vadd.f32 0.0, %v1175
        %1177 = vmatprep.mubr.bf16.mxu0 %v714
        %1178 = vmatmul.mubr.bf16.gmra.mrb[0].mxu0 %v713
        %v1179 = vpop.f32.mrb[0].mxu0
        %v1180 = vadd.f32 0.0, %v1179
        %v1181 = vpop.f32.mrb[0].mxu0
        %v1182 = vadd.f32 0.0, %v1181
        %v1183 = vpop.f32.mrb[0].mxu0
        %v1184 = vadd.f32 0.0, %v1183
        %v1185 = vpop.f32.mrb[0].mxu0
        %v1186 = vadd.f32 0.0, %v1185
        %1187 = vmatprep.mubr.bf16.mxu0 %v716
        %1188 = vmatmul.mubr.bf16.gmra.mrb[0].mxu0 %v715
        %v1189 = vpop.f32.mrb[0].mxu0
        %v1190 = vadd.f32 0.0, %v1189
        %v1191 = vpop.f32.mrb[0].mxu0
        %v1192 = vadd.f32 0.0, %v1191
        %v1193 = vpop.f32.mrb[0].mxu0
        %v1194 = vadd.f32 0.0, %v1193
        %v1195 = vpop.f32.mrb[0].mxu0
        %v1196 = vadd.f32 0.0, %v1195
        %1197 = vmatprep.mubr.bf16.mxu0 %v718
        %1198 = vmatmul.mubr.bf16.gmra.mrb[0].mxu0 %v717
        %v1199 = vpop.f32.mrb[0].mxu0
        %v1200 = vadd.f32 0.0, %v1199
        %v1201 = vpop.f32.mrb[0].mxu0
        %v1202 = vadd.f32 0.0, %v1201
        %v1203 = vpop.f32.mrb[0].mxu0
        %v1204 = vadd.f32 0.0, %v1203
        %v1205 = vpop.f32.mrb[0].mxu0
        %v1206 = vadd.f32 0.0, %v1205
        %1207 = vmatprep.mubr.bf16.mxu0 %v720
        %1208 = vmatmul.mubr.bf16.gmra.mrb[0].mxu0 %v719
        %v1209 = vpop.f32.mrb[0].mxu0
        %v1210 = vadd.f32 0.0, %v1209
        %v1211 = vpop.f32.mrb[0].mxu0
        %v1212 = vadd.f32 0.0, %v1211
        %v1213 = vpop.f32.mrb[0].mxu0
        %v1214 = vadd.f32 0.0, %v1213
        %v1215 = vpop.f32.mrb[0].mxu0
        %v1216 = vadd.f32 0.0, %v1215
        %1217 = vmatprep.mubr.bf16.mxu0 %v722
        %1218 = vmatmul.mubr.bf16.gmra.mrb[0].mxu0 %v721
        %v1219 = vpop.f32.mrb[0].mxu0
        %v1220 = vadd.f32 0.0, %v1219
        %v1221 = vpop.f32.mrb[0].mxu0
        %v1222 = vadd.f32 0.0, %v1221
        %v1223 = vpop.f32.mrb[0].mxu0
        %v1224 = vadd.f32 0.0, %v1223
        %v1225 = vpop.f32.mrb[0].mxu0
        %v1226 = vadd.f32 0.0, %v1225
        %1227 = vmatprep.mubr.bf16.mxu0 %v724
        %1228 = vmatmul.mubr.bf16.gmra.mrb[0].mxu0 %v723
        %v1229 = vpop.f32.mrb[0].mxu0
        %v1230 = vadd.f32 0.0, %v1229
        %v1231 = vpop.f32.mrb[0].mxu0
        %v1232 = vadd.f32 0.0, %v1231
        %v1233 = vpop.f32.mrb[0].mxu0
        %v1234 = vadd.f32 0.0, %v1233
        %v1235 = vpop.f32.mrb[0].mxu0
        %v1236 = vadd.f32 0.0, %v1235
        %1237 = vmatprep.mubr.bf16.mxu0 %v726
        %1238 = vmatmul.mubr.bf16.gmra.mrb[0].mxu0 %v725
        %v1239 = vpop.f32.mrb[0].mxu0
        %v1240 = vadd.f32 0.0, %v1239
        %v1241 = vpop.f32.mrb[0].mxu0
        %v1242 = vadd.f32 0.0, %v1241
        %v1243 = vpop.f32.mrb[0].mxu0
        %v1244 = vadd.f32 0.0, %v1243
        %v1245 = vpop.f32.mrb[0].mxu0
        %v1246 = vadd.f32 0.0, %v1245
        %1247 = vmatprep.mubr.bf16.mxu0 %v728
        %1248 = vmatmul.mubr.bf16.gmra.mrb[0].mxu0 %v727
        %v1249 = vpop.f32.mrb[0].mxu0
        %v1250 = vadd.f32 0.0, %v1249
        %v1251 = vpop.f32.mrb[0].mxu0
        %v1252 = vadd.f32 0.0, %v1251
        %v1253 = vpop.f32.mrb[0].mxu0
        %v1254 = vadd.f32 0.0, %v1253
        %v1255 = vpop.f32.mrb[0].mxu0
        %v1256 = vadd.f32 0.0, %v1255
        %1257 = vmatprep.mubr.bf16.mxu0 %v730
        %1258 = vmatmul.mubr.bf16.gmra.mrb[0].mxu0 %v729
        %v1259 = vpop.f32.mrb[0].mxu0
        %v1260 = vadd.f32 0.0, %v1259
        %v1261 = vpop.f32.mrb[0].mxu0
        %v1262 = vadd.f32 0.0, %v1261
        %v1263 = vpop.f32.mrb[0].mxu0
        %v1264 = vadd.f32 0.0, %v1263
        %v1265 = vpop.f32.mrb[0].mxu0
        %v1266 = vadd.f32 0.0, %v1265
        %1267 = vmatprep.mubr.bf16.mxu0 %v732
        %1268 = vmatmul.mubr.bf16.gmra.mrb[0].mxu0 %v731
        %v1269 = vpop.f32.mrb[0].mxu0
        %v1270 = vadd.f32 0.0, %v1269
        %v1271 = vpop.f32.mrb[0].mxu0
        %v1272 = vadd.f32 0.0, %v1271
        %v1273 = vpop.f32.mrb[0].mxu0
        %v1274 = vadd.f32 0.0, %v1273
        %v1275 = vpop.f32.mrb[0].mxu0
        %v1276 = vadd.f32 0.0, %v1275
        %1277 = vmatprep.mubr.bf16.mxu0 %v734
        %1278 = vmatmul.mubr.bf16.gmra.mrb[0].mxu0 %v733
        %v1279 = vpop.f32.mrb[0].mxu0
        %v1280 = vadd.f32 0.0, %v1279
        %v1281 = vpop.f32.mrb[0].mxu0
        %v1282 = vadd.f32 0.0, %v1281
        %v1283 = vpop.f32.mrb[0].mxu0
        %v1284 = vadd.f32 0.0, %v1283
        %v1285 = vpop.f32.mrb[0].mxu0
        %v1286 = vadd.f32 0.0, %v1285
        %1287 = vmatprep.mubr.bf16.mxu0 %v736
        %1288 = vmatmul.mubr.bf16.gmra.mrb[0].mxu0 %v735
        %v1289 = vpop.f32.mrb[0].mxu0
        %v1290 = vadd.f32 0.0, %v1289
        %v1291 = vpop.f32.mrb[0].mxu0
        %v1292 = vadd.f32 0.0, %v1291
        %v1293 = vpop.f32.mrb[0].mxu0
        %v1294 = vadd.f32 0.0, %v1293
        %v1295 = vpop.f32.mrb[0].mxu0
        %v1296 = vadd.f32 0.0, %v1295
        %1297 = vmatprep.mubr.bf16.mxu0 %v738
        %1298 = vmatmul.mubr.bf16.gmra.mrb[0].mxu0 %v737
        %v1299 = vpop.f32.mrb[0].mxu0
        %v1300 = vadd.f32 0.0, %v1299
        %v1301 = vpop.f32.mrb[0].mxu0
        %v1302 = vadd.f32 0.0, %v1301
        %v1303 = vpop.f32.mrb[0].mxu0
        %v1304 = vadd.f32 0.0, %v1303
        %v1305 = vpop.f32.mrb[0].mxu0
        %v1306 = vadd.f32 0.0, %v1305
        %1307 = vmatprep.mubr.bf16.mxu0 %v740
        %1308 = vmatmul.mubr.bf16.gmra.mrb[0].mxu0 %v739
        %v1309 = vpop.f32.mrb[0].mxu0
        %v1310 = vadd.f32 0.0, %v1309
        %v1311 = vpop.f32.mrb[0].mxu0
        %v1312 = vadd.f32 0.0, %v1311
        %v1313 = vpop.f32.mrb[0].mxu0
        %v1314 = vadd.f32 0.0, %v1313
        %v1315 = vpop.f32.mrb[0].mxu0
        %v1316 = vadd.f32 0.0, %v1315
        %1317 = vdwg.mxu0
        %1318 = vmatprep.subr.bf16.mxu0 %v1000
        %1319 = vmatpush1.bf16.msra.mxu0 %v999
        %1320 = vmatprep.subr.bf16.mxu0 %v1004
        %1321 = vmatpush1.bf16.msra.mxu0 %v1003
        %1322 = vmatprep.subr.bf16.mxu0 %v1008
        %1323 = vmatpush1.bf16.msra.mxu0 %v1007
        %1324 = vmatprep.subr.bf16.mxu0 %v1012
        %1325 = vmatpush1.bf16.msra.mxu0 %v1011
        %1326 = vmatprep.subr.bf16.mxu0 %v1016
        %1327 = vmatpush1.bf16.msra.mxu0 %v1015
        %1328 = vmatprep.subr.bf16.mxu0 %v1020
        %1329 = vmatpush1.bf16.msra.mxu0 %v1019
        %1330 = vmatprep.subr.bf16.mxu0 %v1024
        %1331 = vmatpush1.bf16.msra.mxu0 %v1023
        %1332 = vmatprep.subr.bf16.mxu0 %v1028
        %1333 = vmatpush1.bf16.msra.mxu0 %v1027
        %1334 = vmatprep.subr.bf16.mxu0 %v1032
        %1335 = vmatpush1.bf16.msra.mxu0 %v1031
        %1336 = vmatprep.subr.bf16.mxu0 %v1036
        %1337 = vmatpush1.bf16.msra.mxu0 %v1035
        %1338 = vmatprep.subr.bf16.mxu0 %v1040
        %1339 = vmatpush1.bf16.msra.mxu0 %v1039
        %1340 = vmatprep.subr.bf16.mxu0 %v1044
        %1341 = vmatpush1.bf16.msra.mxu0 %v1043
        %1342 = vmatprep.subr.bf16.mxu0 %v1048
        %1343 = vmatpush1.bf16.msra.mxu0 %v1047
        %1344 = vmatprep.subr.bf16.mxu0 %v1052
        %1345 = vmatpush1.bf16.msra.mxu0 %v1051
        %1346 = vmatprep.subr.bf16.mxu0 %v1056
        %1347 = vmatpush1.bf16.msra.mxu0 %v1055
        %1348 = vmatprep.subr.bf16.mxu0 %v1060
        %1349 = vmatpush1.bf16.msra.mxu0 %v1059
        %1350 = vmatprep.mubr.bf16.mxu0 %v710
        %1351 = vmatmul.mubr.bf16.gmra.mrb[0].mxu0 %v709
        %v1352 = vpop.f32.mrb[0].mxu0
        %v1353 = vadd.f32 0.0, %v1352
        %v1354 = vpop.f32.mrb[0].mxu0
        %v1355 = vadd.f32 0.0, %v1354
        %v1356 = vpop.f32.mrb[0].mxu0
        %v1357 = vadd.f32 0.0, %v1356
        %v1358 = vpop.f32.mrb[0].mxu0
        %v1359 = vadd.f32 0.0, %v1358
        %1360 = vmatprep.mubr.bf16.mxu0 %v712
        %1361 = vmatmul.mubr.bf16.gmra.mrb[0].mxu0 %v711
        %v1362 = vpop.f32.mrb[0].mxu0
        %v1363 = vadd.f32 0.0, %v1362
        %v1364 = vpop.f32.mrb[0].mxu0
        %v1365 = vadd.f32 0.0, %v1364
        %v1366 = vpop.f32.mrb[0].mxu0
        %v1367 = vadd.f32 0.0, %v1366
        %v1368 = vpop.f32.mrb[0].mxu0
        %v1369 = vadd.f32 0.0, %v1368
        %1370 = vmatprep.mubr.bf16.mxu0 %v714
        %1371 = vmatmul.mubr.bf16.gmra.mrb[0].mxu0 %v713
        %v1372 = vpop.f32.mrb[0].mxu0
        %v1373 = vadd.f32 0.0, %v1372
        %v1374 = vpop.f32.mrb[0].mxu0
        %v1375 = vadd.f32 0.0, %v1374
        %v1376 = vpop.f32.mrb[0].mxu0
        %v1377 = vadd.f32 0.0, %v1376
        %v1378 = vpop.f32.mrb[0].mxu0
        %v1379 = vadd.f32 0.0, %v1378
        %1380 = vmatprep.mubr.bf16.mxu0 %v716
        %1381 = vmatmul.mubr.bf16.gmra.mrb[0].mxu0 %v715
        %v1382 = vpop.f32.mrb[0].mxu0
        %v1383 = vadd.f32 0.0, %v1382
        %v1384 = vpop.f32.mrb[0].mxu0
        %v1385 = vadd.f32 0.0, %v1384
        %v1386 = vpop.f32.mrb[0].mxu0
        %v1387 = vadd.f32 0.0, %v1386
        %v1388 = vpop.f32.mrb[0].mxu0
        %v1389 = vadd.f32 0.0, %v1388
        %1390 = vmatprep.mubr.bf16.mxu0 %v718
        %1391 = vmatmul.mubr.bf16.gmra.mrb[0].mxu0 %v717
        %v1392 = vpop.f32.mrb[0].mxu0
        %v1393 = vadd.f32 0.0, %v1392
        %v1394 = vpop.f32.mrb[0].mxu0
        %v1395 = vadd.f32 0.0, %v1394
        %v1396 = vpop.f32.mrb[0].mxu0
        %v1397 = vadd.f32 0.0, %v1396
        %v1398 = vpop.f32.mrb[0].mxu0
        %v1399 = vadd.f32 0.0, %v1398
        %1400 = vmatprep.mubr.bf16.mxu0 %v720
        %1401 = vmatmul.mubr.bf16.gmra.mrb[0].mxu0 %v719
        %v1402 = vpop.f32.mrb[0].mxu0
        %v1403 = vadd.f32 0.0, %v1402
        %v1404 = vpop.f32.mrb[0].mxu0
        %v1405 = vadd.f32 0.0, %v1404
        %v1406 = vpop.f32.mrb[0].mxu0
        %v1407 = vadd.f32 0.0, %v1406
        %v1408 = vpop.f32.mrb[0].mxu0
        %v1409 = vadd.f32 0.0, %v1408
        %1410 = vmatprep.mubr.bf16.mxu0 %v722
        %1411 = vmatmul.mubr.bf16.gmra.mrb[0].mxu0 %v721
        %v1412 = vpop.f32.mrb[0].mxu0
        %v1413 = vadd.f32 0.0, %v1412
        %v1414 = vpop.f32.mrb[0].mxu0
        %v1415 = vadd.f32 0.0, %v1414
        %v1416 = vpop.f32.mrb[0].mxu0
        %v1417 = vadd.f32 0.0, %v1416
        %v1418 = vpop.f32.mrb[0].mxu0
        %v1419 = vadd.f32 0.0, %v1418
        %1420 = vmatprep.mubr.bf16.mxu0 %v724
        %1421 = vmatmul.mubr.bf16.gmra.mrb[0].mxu0 %v723
        %v1422 = vpop.f32.mrb[0].mxu0
        %v1423 = vadd.f32 0.0, %v1422
        %v1424 = vpop.f32.mrb[0].mxu0
        %v1425 = vadd.f32 0.0, %v1424
        %v1426 = vpop.f32.mrb[0].mxu0
        %v1427 = vadd.f32 0.0, %v1426
        %v1428 = vpop.f32.mrb[0].mxu0
        %v1429 = vadd.f32 0.0, %v1428
        %1430 = vmatprep.mubr.bf16.mxu0 %v726
        %1431 = vmatmul.mubr.bf16.gmra.mrb[0].mxu0 %v725
        %v1432 = vpop.f32.mrb[0].mxu0
        %v1433 = vadd.f32 0.0, %v1432
        %v1434 = vpop.f32.mrb[0].mxu0
        %v1435 = vadd.f32 0.0, %v1434
        %v1436 = vpop.f32.mrb[0].mxu0
        %v1437 = vadd.f32 0.0, %v1436
        %v1438 = vpop.f32.mrb[0].mxu0
        %v1439 = vadd.f32 0.0, %v1438
        %1440 = vmatprep.mubr.bf16.mxu0 %v728
        %1441 = vmatmul.mubr.bf16.gmra.mrb[0].mxu0 %v727
        %v1442 = vpop.f32.mrb[0].mxu0
        %v1443 = vadd.f32 0.0, %v1442
        %v1444 = vpop.f32.mrb[0].mxu0
        %v1445 = vadd.f32 0.0, %v1444
        %v1446 = vpop.f32.mrb[0].mxu0
        %v1447 = vadd.f32 0.0, %v1446
        %v1448 = vpop.f32.mrb[0].mxu0
        %v1449 = vadd.f32 0.0, %v1448
        %1450 = vmatprep.mubr.bf16.mxu0 %v730
        %1451 = vmatmul.mubr.bf16.gmra.mrb[0].mxu0 %v729
        %v1452 = vpop.f32.mrb[0].mxu0
        %v1453 = vadd.f32 0.0, %v1452
        %v1454 = vpop.f32.mrb[0].mxu0
        %v1455 = vadd.f32 0.0, %v1454
        %v1456 = vpop.f32.mrb[0].mxu0
        %v1457 = vadd.f32 0.0, %v1456
        %v1458 = vpop.f32.mrb[0].mxu0
        %v1459 = vadd.f32 0.0, %v1458
        %1460 = vmatprep.mubr.bf16.mxu0 %v732
        %1461 = vmatmul.mubr.bf16.gmra.mrb[0].mxu0 %v731
        %v1462 = vpop.f32.mrb[0].mxu0
        %v1463 = vadd.f32 0.0, %v1462
        %v1464 = vpop.f32.mrb[0].mxu0
        %v1465 = vadd.f32 0.0, %v1464
        %v1466 = vpop.f32.mrb[0].mxu0
        %v1467 = vadd.f32 0.0, %v1466
        %v1468 = vpop.f32.mrb[0].mxu0
        %v1469 = vadd.f32 0.0, %v1468
        %1470 = vmatprep.mubr.bf16.mxu0 %v734
        %1471 = vmatmul.mubr.bf16.gmra.mrb[0].mxu0 %v733
        %v1472 = vpop.f32.mrb[0].mxu0
        %v1473 = vadd.f32 0.0, %v1472
        %v1474 = vpop.f32.mrb[0].mxu0
        %v1475 = vadd.f32 0.0, %v1474
        %v1476 = vpop.f32.mrb[0].mxu0
        %v1477 = vadd.f32 0.0, %v1476
        %v1478 = vpop.f32.mrb[0].mxu0
        %v1479 = vadd.f32 0.0, %v1478
        %1480 = vmatprep.mubr.bf16.mxu0 %v736
        %1481 = vmatmul.mubr.bf16.gmra.mrb[0].mxu0 %v735
        %v1482 = vpop.f32.mrb[0].mxu0
        %v1483 = vadd.f32 0.0, %v1482
        %v1484 = vpop.f32.mrb[0].mxu0
        %v1485 = vadd.f32 0.0, %v1484
        %v1486 = vpop.f32.mrb[0].mxu0
        %v1487 = vadd.f32 0.0, %v1486
        %v1488 = vpop.f32.mrb[0].mxu0
        %v1489 = vadd.f32 0.0, %v1488
        %1490 = vmatprep.mubr.bf16.mxu0 %v738
        %1491 = vmatmul.mubr.bf16.gmra.mrb[0].mxu0 %v737
        %v1492 = vpop.f32.mrb[0].mxu0
        %v1493 = vadd.f32 0.0, %v1492
        %v1494 = vpop.f32.mrb[0].mxu0
        %v1495 = vadd.f32 0.0, %v1494
        %v1496 = vpop.f32.mrb[0].mxu0
        %v1497 = vadd.f32 0.0, %v1496
        %v1498 = vpop.f32.mrb[0].mxu0
        %v1499 = vadd.f32 0.0, %v1498
        %1500 = vmatprep.mubr.bf16.mxu0 %v740
        %1501 = vmatmul.mubr.bf16.gmra.mrb[0].mxu0 %v739
        %v1502 = vpop.f32.mrb[0].mxu0
        %v1503 = vadd.f32 0.0, %v1502
        %v1504 = vpop.f32.mrb[0].mxu0
        %v1505 = vadd.f32 0.0, %v1504
        %v1506 = vpop.f32.mrb[0].mxu0
        %v1507 = vadd.f32 0.0, %v1506
        %v1508 = vpop.f32.mrb[0].mxu0
        %v1509 = vadd.f32 0.0, %v1508
        %1510 = vdwg.mxu0
        %v1511 = vpack.c.bf16 %v1164, %v1160
        %v1512 = vpack.c.bf16 %v1166, %v1162
        %v1513 = vpack.c.bf16 %v1357, %v1353
        %v1514 = vpack.c.bf16 %v1359, %v1355
        %v1515 = vpack.c.bf16 %v1174, %v1170
        %v1516 = vpack.c.bf16 %v1176, %v1172
        %v1517 = vpack.c.bf16 %v1367, %v1363
        %v1518 = vpack.c.bf16 %v1369, %v1365
        %v1519 = vpack.c.bf16 %v1184, %v1180
        %v1520 = vpack.c.bf16 %v1186, %v1182
        %v1521 = vpack.c.bf16 %v1377, %v1373
        %v1522 = vpack.c.bf16 %v1379, %v1375
        %v1523 = vpack.c.bf16 %v1194, %v1190
        %v1524 = vpack.c.bf16 %v1196, %v1192
        %v1525 = vpack.c.bf16 %v1387, %v1383
        %v1526 = vpack.c.bf16 %v1389, %v1385
        %v1527 = vpack.c.bf16 %v1204, %v1200
        %v1528 = vpack.c.bf16 %v1206, %v1202
        %v1529 = vpack.c.bf16 %v1397, %v1393
        %v1530 = vpack.c.bf16 %v1399, %v1395
        %v1531 = vpack.c.bf16 %v1214, %v1210
        %v1532 = vpack.c.bf16 %v1216, %v1212
        %v1533 = vpack.c.bf16 %v1407, %v1403
        %v1534 = vpack.c.bf16 %v1409, %v1405
        %v1535 = vpack.c.bf16 %v1224, %v1220
        %v1536 = vpack.c.bf16 %v1226, %v1222
        %v1537 = vpack.c.bf16 %v1417, %v1413
        %v1538 = vpack.c.bf16 %v1419, %v1415
        %v1539 = vpack.c.bf16 %v1234, %v1230
        %v1540 = vpack.c.bf16 %v1236, %v1232
        %v1541 = vpack.c.bf16 %v1427, %v1423
        %v1542 = vpack.c.bf16 %v1429, %v1425
        %v1543 = vpack.c.bf16 %v1244, %v1240
        %v1544 = vpack.c.bf16 %v1246, %v1242
        %v1545 = vpack.c.bf16 %v1437, %v1433
        %v1546 = vpack.c.bf16 %v1439, %v1435
        %v1547 = vpack.c.bf16 %v1254, %v1250
        %v1548 = vpack.c.bf16 %v1256, %v1252
        %v1549 = vpack.c.bf16 %v1447, %v1443
        %v1550 = vpack.c.bf16 %v1449, %v1445
        %v1551 = vpack.c.bf16 %v1264, %v1260
        %v1552 = vpack.c.bf16 %v1266, %v1262
        %v1553 = vpack.c.bf16 %v1457, %v1453
        %v1554 = vpack.c.bf16 %v1459, %v1455
        %v1555 = vpack.c.bf16 %v1274, %v1270
        %v1556 = vpack.c.bf16 %v1276, %v1272
        %v1557 = vpack.c.bf16 %v1467, %v1463
        %v1558 = vpack.c.bf16 %v1469, %v1465
        %v1559 = vpack.c.bf16 %v1284, %v1280
        %v1560 = vpack.c.bf16 %v1286, %v1282
        %v1561 = vpack.c.bf16 %v1477, %v1473
        %v1562 = vpack.c.bf16 %v1479, %v1475
        %v1563 = vpack.c.bf16 %v1294, %v1290
        %v1564 = vpack.c.bf16 %v1296, %v1292
        %v1565 = vpack.c.bf16 %v1487, %v1483
        %v1566 = vpack.c.bf16 %v1489, %v1485
        %v1567 = vpack.c.bf16 %v1304, %v1300
        %v1568 = vpack.c.bf16 %v1306, %v1302
        %v1569 = vpack.c.bf16 %v1497, %v1493
        %v1570 = vpack.c.bf16 %v1499, %v1495
        %v1571 = vpack.c.bf16 %v1314, %v1310
        %v1572 = vpack.c.bf16 %v1316, %v1312
        %v1573 = vpack.c.bf16 %v1507, %v1503
        %v1574 = vpack.c.bf16 %v1509, %v1505
        %v1639 = vunpack.c.l.b16 %v1511
        %v1640 = vunpack.c.l.b16 %v1512
        %v1641 = vunpack.c.l.b16 %v1513
        %v1642 = vunpack.c.l.b16 %v1514
        %v1643 = vunpack.c.h.b16 %v1511
        %v1644 = vunpack.c.h.b16 %v1512
        %v1645 = vunpack.c.h.b16 %v1513
        %v1646 = vunpack.c.h.b16 %v1514
        %v1647 = vunpack.c.l.b16 %v1515
        %v1648 = vunpack.c.l.b16 %v1516
        %v1649 = vunpack.c.l.b16 %v1517
        %v1650 = vunpack.c.l.b16 %v1518
        %v1651 = vunpack.c.h.b16 %v1515
        %v1652 = vunpack.c.h.b16 %v1516
        %v1653 = vunpack.c.h.b16 %v1517
        %v1654 = vunpack.c.h.b16 %v1518
        %v1655 = vunpack.c.l.b16 %v1519
        %v1656 = vunpack.c.l.b16 %v1520
        %v1657 = vunpack.c.l.b16 %v1521
        %v1658 = vunpack.c.l.b16 %v1522
        %v1659 = vunpack.c.h.b16 %v1519
        %v1660 = vunpack.c.h.b16 %v1520
        %v1661 = vunpack.c.h.b16 %v1521
        %v1662 = vunpack.c.h.b16 %v1522
        %v1663 = vunpack.c.l.b16 %v1523
        %v1664 = vunpack.c.l.b16 %v1524
        %v1665 = vunpack.c.l.b16 %v1525
        %v1666 = vunpack.c.l.b16 %v1526
        %v1667 = vunpack.c.h.b16 %v1523
        %v1668 = vunpack.c.h.b16 %v1524
        %v1669 = vunpack.c.h.b16 %v1525
        %v1670 = vunpack.c.h.b16 %v1526
        %v1671 = vunpack.c.l.b16 %v1527
        %v1672 = vunpack.c.l.b16 %v1528
        %v1673 = vunpack.c.l.b16 %v1529
        %v1674 = vunpack.c.l.b16 %v1530
        %v1675 = vunpack.c.h.b16 %v1527
        %v1676 = vunpack.c.h.b16 %v1528
        %v1677 = vunpack.c.h.b16 %v1529
        %v1678 = vunpack.c.h.b16 %v1530
        %v1679 = vunpack.c.l.b16 %v1531
        %v1680 = vunpack.c.l.b16 %v1532
        %v1681 = vunpack.c.l.b16 %v1533
        %v1682 = vunpack.c.l.b16 %v1534
        %v1683 = vunpack.c.h.b16 %v1531
        %v1684 = vunpack.c.h.b16 %v1532
        %v1685 = vunpack.c.h.b16 %v1533
        %v1686 = vunpack.c.h.b16 %v1534
        %v1687 = vunpack.c.l.b16 %v1535
        %v1688 = vunpack.c.l.b16 %v1536
        %v1689 = vunpack.c.l.b16 %v1537
        %v1690 = vunpack.c.l.b16 %v1538
        %v1691 = vunpack.c.h.b16 %v1535
        %v1692 = vunpack.c.h.b16 %v1536
        %v1693 = vunpack.c.h.b16 %v1537
        %v1694 = vunpack.c.h.b16 %v1538
        %v1695 = vunpack.c.l.b16 %v1539
        %v1696 = vunpack.c.l.b16 %v1540
        %v1697 = vunpack.c.l.b16 %v1541
        %v1698 = vunpack.c.l.b16 %v1542
        %v1699 = vunpack.c.h.b16 %v1539
        %v1700 = vunpack.c.h.b16 %v1540
        %v1701 = vunpack.c.h.b16 %v1541
        %v1702 = vunpack.c.h.b16 %v1542
        %v1703 = vunpack.c.l.b16 %v1543
        %v1704 = vunpack.c.l.b16 %v1544
        %v1705 = vunpack.c.l.b16 %v1545
        %v1706 = vunpack.c.l.b16 %v1546
        %v1707 = vunpack.c.h.b16 %v1543
        %v1708 = vunpack.c.h.b16 %v1544
        %v1709 = vunpack.c.h.b16 %v1545
        %v1710 = vunpack.c.h.b16 %v1546
        %v1711 = vunpack.c.l.b16 %v1547
        %v1712 = vunpack.c.l.b16 %v1548
        %v1713 = vunpack.c.l.b16 %v1549
        %v1714 = vunpack.c.l.b16 %v1550
        %v1715 = vunpack.c.h.b16 %v1547
        %v1716 = vunpack.c.h.b16 %v1548
        %v1717 = vunpack.c.h.b16 %v1549
        %v1718 = vunpack.c.h.b16 %v1550
        %v1719 = vunpack.c.l.b16 %v1551
        %v1720 = vunpack.c.l.b16 %v1552
        %v1721 = vunpack.c.l.b16 %v1553
        %v1722 = vunpack.c.l.b16 %v1554
        %v1723 = vunpack.c.h.b16 %v1551
        %v1724 = vunpack.c.h.b16 %v1552
        %v1725 = vunpack.c.h.b16 %v1553
        %v1726 = vunpack.c.h.b16 %v1554
        %v1727 = vunpack.c.l.b16 %v1555
        %v1728 = vunpack.c.l.b16 %v1556
        %v1729 = vunpack.c.l.b16 %v1557
        %v1730 = vunpack.c.l.b16 %v1558
        %v1731 = vunpack.c.h.b16 %v1555
        %v1732 = vunpack.c.h.b16 %v1556
        %v1733 = vunpack.c.h.b16 %v1557
        %v1734 = vunpack.c.h.b16 %v1558
        %v1735 = vunpack.c.l.b16 %v1559
        %v1736 = vunpack.c.l.b16 %v1560
        %v1737 = vunpack.c.l.b16 %v1561
        %v1738 = vunpack.c.l.b16 %v1562
        %v1739 = vunpack.c.h.b16 %v1559
        %v1740 = vunpack.c.h.b16 %v1560
        %v1741 = vunpack.c.h.b16 %v1561
        %v1742 = vunpack.c.h.b16 %v1562
        %v1743 = vunpack.c.l.b16 %v1563
        %v1744 = vunpack.c.l.b16 %v1564
        %v1745 = vunpack.c.l.b16 %v1565
        %v1746 = vunpack.c.l.b16 %v1566
        %v1747 = vunpack.c.h.b16 %v1563
        %v1748 = vunpack.c.h.b16 %v1564
        %v1749 = vunpack.c.h.b16 %v1565
        %v1750 = vunpack.c.h.b16 %v1566
        %v1751 = vunpack.c.l.b16 %v1567
        %v1752 = vunpack.c.l.b16 %v1568
        %v1753 = vunpack.c.l.b16 %v1569
        %v1754 = vunpack.c.l.b16 %v1570
        %v1755 = vunpack.c.h.b16 %v1567
        %v1756 = vunpack.c.h.b16 %v1568
        %v1757 = vunpack.c.h.b16 %v1569
        %v1758 = vunpack.c.h.b16 %v1570
        %v1759 = vunpack.c.l.b16 %v1571
        %v1760 = vunpack.c.l.b16 %v1572
        %v1761 = vunpack.c.l.b16 %v1573
        %v1762 = vunpack.c.l.b16 %v1574
        %v1763 = vunpack.c.h.b16 %v1571
        %v1764 = vunpack.c.h.b16 %v1572
        %v1765 = vunpack.c.h.b16 %v1573
        %v1766 = vunpack.c.h.b16 %v1574
        %v1767 = vpack.c.b16 %v1640, %v1639
        %v1768 = vpack.c.b16 %v1642, %v1641
        %v1769 = vpack.c.b16 %v1644, %v1643
        %v1770 = vpack.c.b16 %v1646, %v1645
        %v1771 = vpack.c.b16 %v1648, %v1647
        %v1772 = vpack.c.b16 %v1650, %v1649
        %v1773 = vpack.c.b16 %v1652, %v1651
        %v1774 = vpack.c.b16 %v1654, %v1653
        %v1775 = vpack.c.b16 %v1656, %v1655
        %v1776 = vpack.c.b16 %v1658, %v1657
        %v1777 = vpack.c.b16 %v1660, %v1659
        %v1778 = vpack.c.b16 %v1662, %v1661
        %v1779 = vpack.c.b16 %v1664, %v1663
        %v1780 = vpack.c.b16 %v1666, %v1665
        %v1781 = vpack.c.b16 %v1668, %v1667
        %v1782 = vpack.c.b16 %v1670, %v1669
        %v1783 = vpack.c.b16 %v1672, %v1671
        %v1784 = vpack.c.b16 %v1674, %v1673
        %v1785 = vpack.c.b16 %v1676, %v1675
        %v1786 = vpack.c.b16 %v1678, %v1677
        %v1787 = vpack.c.b16 %v1680, %v1679
        %v1788 = vpack.c.b16 %v1682, %v1681
        %v1789 = vpack.c.b16 %v1684, %v1683
        %v1790 = vpack.c.b16 %v1686, %v1685
        %v1791 = vpack.c.b16 %v1688, %v1687
        %v1792 = vpack.c.b16 %v1690, %v1689
        %v1793 = vpack.c.b16 %v1692, %v1691
        %v1794 = vpack.c.b16 %v1694, %v1693
        %v1795 = vpack.c.b16 %v1696, %v1695
        %v1796 = vpack.c.b16 %v1698, %v1697
        %v1797 = vpack.c.b16 %v1700, %v1699
        %v1798 = vpack.c.b16 %v1702, %v1701
        %v1799 = vpack.c.b16 %v1704, %v1703
        %v1800 = vpack.c.b16 %v1706, %v1705
        %v1801 = vpack.c.b16 %v1708, %v1707
        %v1802 = vpack.c.b16 %v1710, %v1709
        %v1803 = vpack.c.b16 %v1712, %v1711
        %v1804 = vpack.c.b16 %v1714, %v1713
        %v1805 = vpack.c.b16 %v1716, %v1715
        %v1806 = vpack.c.b16 %v1718, %v1717
        %v1807 = vpack.c.b16 %v1720, %v1719
        %v1808 = vpack.c.b16 %v1722, %v1721
        %v1809 = vpack.c.b16 %v1724, %v1723
        %v1810 = vpack.c.b16 %v1726, %v1725
        %v1811 = vpack.c.b16 %v1728, %v1727
        %v1812 = vpack.c.b16 %v1730, %v1729
        %v1813 = vpack.c.b16 %v1732, %v1731
        %v1814 = vpack.c.b16 %v1734, %v1733
        %v1815 = vpack.c.b16 %v1736, %v1735
        %v1816 = vpack.c.b16 %v1738, %v1737
        %v1817 = vpack.c.b16 %v1740, %v1739
        %v1818 = vpack.c.b16 %v1742, %v1741
        %v1819 = vpack.c.b16 %v1744, %v1743
        %v1820 = vpack.c.b16 %v1746, %v1745
        %v1821 = vpack.c.b16 %v1748, %v1747
        %v1822 = vpack.c.b16 %v1750, %v1749
        %v1823 = vpack.c.b16 %v1752, %v1751
        %v1824 = vpack.c.b16 %v1754, %v1753
        %v1825 = vpack.c.b16 %v1756, %v1755
        %v1826 = vpack.c.b16 %v1758, %v1757
        %v1827 = vpack.c.b16 %v1760, %v1759
        %v1828 = vpack.c.b16 %v1762, %v1761
        %v1829 = vpack.c.b16 %v1764, %v1763
        %v1830 = vpack.c.b16 %v1766, %v1765
        %1895 = vst [vmem:[%s204] sm:$0xff] %v1767
        %1896 = vst [vmem:[%s204 + $0x8] sm:$0xff] %v1768
        %1897 = vst [vmem:[%s204 + $0x10] sm:$0xff] %v1769
        %1898 = vst [vmem:[%s204 + $0x18] sm:$0xff] %v1770
        %1899 = vst [vmem:[%s204 + $0x20] sm:$0xff] %v1771
        %1900 = vst [vmem:[%s204 + $0x28] sm:$0xff] %v1772
        %1901 = vst [vmem:[%s204 + $0x30] sm:$0xff] %v1773
        %1902 = vst [vmem:[%s204 + $0x38] sm:$0xff] %v1774
        %1903 = vst [vmem:[%s204 + $0x40] sm:$0xff] %v1775
        %1904 = vst [vmem:[%s204 + $0x48] sm:$0xff] %v1776
        %1905 = vst [vmem:[%s204 + $0x50] sm:$0xff] %v1777
        %1906 = vst [vmem:[%s204 + $0x58] sm:$0xff] %v1778
        %1907 = vst [vmem:[%s204 + $0x60] sm:$0xff] %v1779
        %1908 = vst [vmem:[%s204 + $0x68] sm:$0xff] %v1780
        %1909 = vst [vmem:[%s204 + $0x70] sm:$0xff] %v1781
        %1910 = vst [vmem:[%s204 + $0x78] sm:$0xff] %v1782
        %1911 = vst [vmem:[%s204 + $0x80] sm:$0xff] %v1783
        %1912 = vst [vmem:[%s204 + $0x88] sm:$0xff] %v1784
        %1913 = vst [vmem:[%s204 + $0x90] sm:$0xff] %v1785
        %1914 = vst [vmem:[%s204 + $0x98] sm:$0xff] %v1786
        %1915 = vst [vmem:[%s204 + $0xa0] sm:$0xff] %v1787
        %1916 = vst [vmem:[%s204 + $0xa8] sm:$0xff] %v1788
        %1917 = vst [vmem:[%s204 + $0xb0] sm:$0xff] %v1789
        %1918 = vst [vmem:[%s204 + $0xb8] sm:$0xff] %v1790
        %1919 = vst [vmem:[%s204 + $0xc0] sm:$0xff] %v1791
        %1920 = vst [vmem:[%s204 + $0xc8] sm:$0xff] %v1792
        %1921 = vst [vmem:[%s204 + $0xd0] sm:$0xff] %v1793
        %1922 = vst [vmem:[%s204 + $0xd8] sm:$0xff] %v1794
        %1923 = vst [vmem:[%s204 + $0xe0] sm:$0xff] %v1795
        %1924 = vst [vmem:[%s204 + $0xe8] sm:$0xff] %v1796
        %1925 = vst [vmem:[%s204 + $0xf0] sm:$0xff] %v1797
        %1926 = vst [vmem:[%s204 + $0xf8] sm:$0xff] %v1798
        %1927 = vst [vmem:[%s204 + $0x100] sm:$0xff] %v1799
        %1928 = vst [vmem:[%s204 + $0x108] sm:$0xff] %v1800
        %1929 = vst [vmem:[%s204 + $0x110] sm:$0xff] %v1801
        %1930 = vst [vmem:[%s204 + $0x118] sm:$0xff] %v1802
        %1931 = vst [vmem:[%s204 + $0x120] sm:$0xff] %v1803
        %1932 = vst [vmem:[%s204 + $0x128] sm:$0xff] %v1804
        %1933 = vst [vmem:[%s204 + $0x130] sm:$0xff] %v1805
        %1934 = vst [vmem:[%s204 + $0x138] sm:$0xff] %v1806
        %1935 = vst [vmem:[%s204 + $0x140] sm:$0xff] %v1807
        %1936 = vst [vmem:[%s204 + $0x148] sm:$0xff] %v1808
        %1937 = vst [vmem:[%s204 + $0x150] sm:$0xff] %v1809
        %1938 = vst [vmem:[%s204 + $0x158] sm:$0xff] %v1810
        %1939 = vst [vmem:[%s204 + $0x160] sm:$0xff] %v1811
        %1940 = vst [vmem:[%s204 + $0x168] sm:$0xff] %v1812
        %1941 = vst [vmem:[%s204 + $0x170] sm:$0xff] %v1813
        %1942 = vst [vmem:[%s204 + $0x178] sm:$0xff] %v1814
        %1943 = vst [vmem:[%s204 + $0x180] sm:$0xff] %v1815
        %1944 = vst [vmem:[%s204 + $0x188] sm:$0xff] %v1816
        %1945 = vst [vmem:[%s204 + $0x190] sm:$0xff] %v1817
        %1946 = vst [vmem:[%s204 + $0x198] sm:$0xff] %v1818
        %1947 = vst [vmem:[%s204 + $0x1a0] sm:$0xff] %v1819
        %1948 = vst [vmem:[%s204 + $0x1a8] sm:$0xff] %v1820
        %1949 = vst [vmem:[%s204 + $0x1b0] sm:$0xff] %v1821
        %1950 = vst [vmem:[%s204 + $0x1b8] sm:$0xff] %v1822
        %1951 = vst [vmem:[%s204 + $0x1c0] sm:$0xff] %v1823
        %1952 = vst [vmem:[%s204 + $0x1c8] sm:$0xff] %v1824
        %1953 = vst [vmem:[%s204 + $0x1d0] sm:$0xff] %v1825
        %1954 = vst [vmem:[%s204 + $0x1d8] sm:$0xff] %v1826
        %1955 = vst [vmem:[%s204 + $0x1e0] sm:$0xff] %v1827
        %1956 = vst [vmem:[%s204 + $0x1e8] sm:$0xff] %v1828
        %1957 = vst [vmem:[%s204 + $0x1f0] sm:$0xff] %v1829
        %1958 = vst [vmem:[%s204 + $0x1f8] sm:$0xff] %v1830
        %s1959 = sand.u32 %s97, 1
        %s1960 = scalar_lea.sflag [#allocation4], %s1959
        %s1961 = sand.u32 %s97, 1
        %s1962 = smul.addr %s1961, 512
        %s1963 = scalar_lea.vmem [#allocation7], %s1962
        // Predicated region
        $region41: #{tpu_custom_call.1} parent=31 // pred_check
          %p1964 = pneg %p107
        $region42: #{tpu_custom_call.1} parent=31 // pred_check_branch
          %1966 = sbr.rel (%p1964) target = $region44
        $region43: #{tpu_custom_call.1} parent=31 // pred_region
          %s1967 = smul.u32 32, %s21
          %s1969 = ssub.s32 8192, 8192
          %1970 = vsyncadd %s1960, %s1969
          %s1971 = smul.addr %s1967, 4
          %s1972 = smul.addr %s1971, 64
          %s1973 = scalar_lea.hbm %s3, %s1972
          %s1974 = sshll.u32 %s1963, 4
          %s1975 = int_to_ptr.vmem [resolvable:$true] %s1974
          %1980 = dma.vmem_to_hbm [thread:$0]  %s1975, 8192, %s1973, %s1960, 256, 256, 16
        $region44: #{tpu_custom_call.1} parent=31 // pred_fallthru
          _
      $region32: #{tpu_custom_call.1} parent=5 // pred_fallthru
        _
      %p1981 = scmp.le.s32.totalorder 2, %s16
      // Predicated region
      $region45: #{tpu_custom_call.1} parent=5 // pred_check
        %p1982 = pneg %p1981
      $region46: #{tpu_custom_call.1} parent=5 // pred_check_branch
        %1984 = sbr.rel (%p1982) target = $region48
      $region47: #{tpu_custom_call.1} parent=5 // pred_region
        %s1985 = ssub.s32 %s16, 2
        // Predicated region
        $region49: #{tpu_custom_call.1} parent=47 // pred_check
          %p1986 = pneg %p113
        $region50: #{tpu_custom_call.1} parent=47 // pred_check_branch
          %1988 = sbr.rel (%p1986) target = $region52
        $region51: #{tpu_custom_call.1} parent=47 // pred_region
          %s1989 = sand.u32 %s98, 1
          %s1990 = scalar_lea.sflag [#allocation4], %s1989
          %s1991 = sand.u32 %s98, 1
          %s1992 = smul.addr %s1991, 512
          %s1993 = scalar_lea.vmem [#allocation7], %s1992
          %1994 = dma.done %s1990, 8192
        $region52: #{tpu_custom_call.1} parent=47 // pred_fallthru
          _
      $region48: #{tpu_custom_call.1} parent=5 // pred_fallthru
        _
    $region6: #{tpu_custom_call.1} parent=1 // loop_footer
      %s20 = sadd.s32 1, %s16
    $region7: #{tpu_custom_call.1} parent=1 // loop_footer_branch
      %15 = sbr.rel target = $region3
    $region8: #{tpu_custom_call.1} parent=1 // loop_exit
      _
    %1995 = vsyncpa [#allocation3], 1
    %s1996 = scalar_lea.sflag [#allocation3], 1
    %1997 = vsyncpa %s1996, 1
    %1998 = vsyncpa [#allocation6], 1
    %1999 = vsyncpa [#allocation4], 1
    %s2000 = scalar_lea.sflag [#allocation4], 1
    %2001 = vsyncpa %s2000, 1

</llo_original>
